<compile_context>
chip_gen: v7x
topology: tpu7x:2x2x1
jax: 0.10.0
libtpu: 0.0.40
codegen_flags: <defaults>
</compile_context>

<pallas_src>
import functools

import jax
import jax.numpy as jnp
from jax.experimental import pallas as pl
from jax.experimental.pallas import tpu as pltpu

EPS = 1e-5  # PyTorch BatchNorm1d default


# ---------------------------------------------------------------------------
# Kernels
# ---------------------------------------------------------------------------
def _bn_leaky(h, gamma, beta, slope, inv_b):
    # Training-mode BatchNorm1d (batch stats, biased variance) fused with LeakyReLU.
    # Single reduction pass: var = E[h^2] - mu^2 (guarded against cancellation).
    s = jnp.sum(h, axis=0, keepdims=True)
    sq = jnp.sum(h * h, axis=0, keepdims=True)
    mu = s * inv_b
    var = jnp.maximum(sq * inv_b - mu * mu, 0.0)
    scale = jax.lax.rsqrt(var + EPS) * gamma          # (1, F): fold before broadcast
    h = (h - mu) * scale + beta
    return jnp.where(h > 0, h, slope * h)


def hidden_kernel(slopes, inv_b,
                  x_ref,
                  w1_ref, b1_ref, g1_ref, be1_ref,
                  w2_ref, b2_ref, g2_ref, be2_ref,
                  w3_ref, b3_ref, g3_ref, be3_ref,
                  h_ref):
    """Layers 1-3: (Linear -> BatchNorm1d -> LeakyReLU) x3, whole batch resident."""
    s1, s2, s3 = slopes

    x = x_ref[...].astype(jnp.bfloat16)
    h = jnp.dot(x, w1_ref[...], preferred_element_type=jnp.float32) + b1_ref[...]
    h = _bn_leaky(h, g1_ref[...], be1_ref[...], s1, inv_b)

    h = jnp.dot(h.astype(jnp.bfloat16), w2_ref[...],
                preferred_element_type=jnp.float32) + b2_ref[...]
    h = _bn_leaky(h, g2_ref[...], be2_ref[...], s2, inv_b)

    h = jnp.dot(h.astype(jnp.bfloat16), w3_ref[...],
                preferred_element_type=jnp.float32) + b3_ref[...]
    h = _bn_leaky(h, g3_ref[...], be3_ref[...], s3, inv_b)

    # bf16 store: this is exactly the bf16 MXU operand of the final Linear.
    h_ref[...] = h.astype(jnp.bfloat16)


def output_kernel(h_ref, w4_ref, b4_ref, o_ref):
    """Final Linear + Tanh on a row tile of the batch (BN-free, pipelined)."""
    h = jnp.dot(h_ref[...], w4_ref[...], preferred_element_type=jnp.float32) + b4_ref[...]
    # TODO(synk): on v6e/v7x a bf16 tanh (bf16 EUP) roughly doubles transcendental
    # throughput; kept f32 here for v5e compatibility and PyTorch-close numerics.
    o_ref[...] = jnp.tanh(h).astype(o_ref.dtype)


# ---------------------------------------------------------------------------
# Wrappers
# ---------------------------------------------------------------------------
def _full_spec(shape):
    # whole array as a single VMEM block
    return pl.BlockSpec(shape, lambda: (0,) * len(shape))


def _vmem_cap_bytes():
    """Per-generation VMEM cap with ~20% headroom for compiler scratch/buffers."""
    try:
        cap = int(getattr(pltpu.get_tpu_info(), "vmem_capacity_bytes", 64 * 2**20))
    except Exception:  # pragma: no cover - conservative fallback
        cap = 64 * 2**20
    return int(0.8 * cap)   # ~51 MiB on v7x (64 MiB), ~102 MiB on v5e/v6e (128 MiB)


def prepare_params(params):
    """One-time prep: bf16-cast the matmul weights; keep bias / BN affine in f32."""
    prepped = dict(params)
    for k in ("w1", "w2", "w3", "w4"):
        prepped[k] = params[k].astype(jnp.bfloat16)
    return prepped


def generator_forward(x, prepped, slopes, *, out_dtype=jnp.float32, tile_rows=512):
    B = x.shape[0]
    H1 = prepped["w1"].shape[1]
    H2 = prepped["w2"].shape[1]
    H3 = prepped["w3"].shape[1]
    OUT = prepped["w4"].shape[1]
    inv_b = 1.0 / B
    cap = _vmem_cap_bytes()

    # ---- Stage 1: whole-batch layers 1-3 (BN statistics span the full batch) ----
    hidden_args = (
        x,
        prepped["w1"], prepped["b1"], prepped["g1"], prepped["be1"],
        prepped["w2"], prepped["b2"], prepped["g2"], prepped["be2"],
        prepped["w3"], prepped["b3"], prepped["g3"], prepped["be3"],
    )
    act_bytes = 4 * B * (x.shape[1] + H1 + H2 + H3) + 2 * B * H3
    wgt_bytes = sum(int(a.size) * a.dtype.itemsize for a in hidden_args)
    vmem1 = int(min(max(2 * (act_bytes + wgt_bytes), 32 * 2**20), cap))
    flops1 = 2 * B * (x.shape[1] * H1 + H1 * H2 + H2 * H3)

    h3 = pl.pallas_call(
        functools.partial(hidden_kernel, slopes, inv_b),
        out_shape=jax.ShapeDtypeStruct((B, H3), jnp.bfloat16),
        in_specs=[_full_spec(a.shape) for a in hidden_args],
        out_specs=_full_spec((B, H3)),
        compiler_params=pltpu.CompilerParams(vmem_limit_bytes=vmem1),
        cost_estimate=pl.CostEstimate(
            flops=int(flops1),
            transcendentals=int(H1 + H2 + H3),          # rsqrt per feature
            bytes_accessed=int(act_bytes + wgt_bytes)),
    )(*hidden_args)
    # TODO(synk): for batches too large to keep stage-1 VMEM-resident, switch it to
    # a (pass, batch-tile) grid accumulating per-layer sum/sumsq across tiles before
    # normalizing (BN statistics must still span the FULL batch).

    # ---- Stage 2: batch-tiled final Linear + Tanh (pipelined, megacore-parallel) ----
    TB = min(int(tile_rows), B)
    grid = (pl.cdiv(B, TB),)
    out_item = jnp.dtype(out_dtype).itemsize
    bytes2 = B * H3 * 2 + H3 * OUT * 2 + OUT * 4 + B * OUT * out_item
    tile_bytes = 2 * (TB * H3 * 2 + H3 * OUT * 2 + OUT * 4 + TB * OUT * out_item)
    vmem2 = int(min(max(2 * tile_bytes, 32 * 2**20), cap))

    out = pl.pallas_call(
        output_kernel,
        out_shape=jax.ShapeDtypeStruct((B, OUT), out_dtype),
        grid=grid,
        in_specs=[pl.BlockSpec((TB, H3), lambda i: (i, 0)),
                  pl.BlockSpec((H3, OUT), lambda i: (0, 0)),
                  pl.BlockSpec((1, OUT), lambda i: (0, 0))],
        out_specs=pl.BlockSpec((TB, OUT), lambda i: (i, 0)),
        compiler_params=pltpu.CompilerParams(
            dimension_semantics=("parallel",),
            vmem_limit_bytes=vmem2),
        cost_estimate=pl.CostEstimate(
            flops=int(2 * B * H3 * OUT),
            transcendentals=int(B * OUT),
            bytes_accessed=int(bytes2)),
    )(h3, prepped["w4"], prepped["b4"])
    return out


def make_generator(params, config, *, out_dtype=jnp.float32):
    """Hoist weight prep out of the per-call path and jit the fused forward."""
    prepped = prepare_params(params)
    slopes = (float(config["leaky_relu_1"]), float(config["leaky_relu_2"]),
              float(config["leaky_relu_3"]))

    @jax.jit
    def forward(x):
        return generator_forward(x, prepped, slopes, out_dtype=out_dtype)

    return forward


# ---------------------------------------------------------------------------
# Synthetic params + references
# ---------------------------------------------------------------------------
def init_params(key, config):
    """Deterministic synthetic parameters (PyTorch shapes, Linear weights transposed)."""
    sizes = [config["latent_size"], config["hidden_1"], config["hidden_2"],
             config["hidden_3"], 784]
    params = {}
    keys = jax.random.split(key, 16)
    ki = 0
    for layer in range(4):
        fin, fout = sizes[layer], sizes[layer + 1]
        params[f"w{layer+1}"] = (0.05 * jax.random.normal(keys[ki], (fin, fout))
                                 ).astype(jnp.float32); ki += 1
        params[f"b{layer+1}"] = (0.05 * jax.random.normal(keys[ki], (1, fout))
                                 ).astype(jnp.float32); ki += 1
        if layer < 3:  # batch norm affine params (gamma, beta)
            params[f"g{layer+1}"] = (1.0 + 0.05 * jax.random.normal(keys[ki], (1, fout))
                                     ).astype(jnp.float32); ki += 1
            params[f"be{layer+1}"] = (0.05 * jax.random.normal(keys[ki], (1, fout))
                                      ).astype(jnp.float32); ki += 1
    return params


def reference_forward_f32(x, params, config):
    """Pure-JAX f32 reference mirroring PyTorch training-mode forward exactly."""
    slopes = (config["leaky_relu_1"], config["leaky_relu_2"], config["leaky_relu_3"])
    h = x
    for layer in range(3):
        h = h @ params[f"w{layer+1}"] + params[f"b{layer+1}"]
        mu = jnp.mean(h, axis=0, keepdims=True)
        var = jnp.mean((h - mu) ** 2, axis=0, keepdims=True)
        h = (h - mu) / jnp.sqrt(var + EPS) * params[f"g{layer+1}"] + params[f"be{layer+1}"]
        h = jnp.where(h > 0, h, slopes[layer] * h)
    h = h @ params["w4"] + params["b4"]
    return jnp.tanh(h)


def reference_forward_bf16(x, params, config):
    """Reference using the same bf16 MXU operands / f32 math as the kernels."""
    slopes = (config["leaky_relu_1"], config["leaky_relu_2"], config["leaky_relu_3"])
    h = x
    for layer in range(3):
        w = params[f"w{layer+1}"].astype(jnp.bfloat16)
        h = jnp.dot(h.astype(jnp.bfloat16), w,
                    preferred_element_type=jnp.float32) + params[f"b{layer+1}"]
        mu = jnp.mean(h, axis=0, keepdims=True)
        var = jnp.maximum(jnp.mean(h * h, axis=0, keepdims=True) - mu * mu, 0.0)
        h = (h - mu) * (jax.lax.rsqrt(var + EPS) * params[f"g{layer+1}"]) \
            + params[f"be{layer+1}"]
        h = jnp.where(h > 0, h, slopes[layer] * h)
    h = jnp.dot(h.astype(jnp.bfloat16), params["w4"].astype(jnp.bfloat16),
                preferred_element_type=jnp.float32) + params["b4"]
    return jnp.tanh(h)


if __name__ == "__main__":
    config = {
        "latent_size": 16,
        "hidden_1": 32,
        "hidden_2": 64,
        "hidden_3": 128,
        "leaky_relu_1": 0.1,
        "leaky_relu_2": 0.2,
        "leaky_relu_3": 0.3,
    }
    key = jax.random.PRNGKey(0)
    kx, kp = jax.random.split(key)
    B = 64  # small demo batch; same fused path scales to thousands of rows
    x = jax.random.normal(kx, (B, config["latent_size"]), dtype=jnp.float32)
    params = init_params(kp, config)

    forward = make_generator(params, config)
    out = jax.block_until_ready(forward(x))
    assert out.shape == (B, 784)

    # Tight check vs a reference with identical bf16-weight arithmetic.
    ref_same = reference_forward_bf16(x, params, config)
    assert jnp.allclose(out, ref_same, atol=2e-3, rtol=2e-3), \
        float(jnp.max(jnp.abs(out - ref_same)))

    # Loose check vs the exact f32 PyTorch-semantics reference (bf16 weight quant).
    ref_f32 = reference_forward_f32(x, params, config)
    assert float(jnp.max(jnp.abs(out - ref_f32))) < 1e-1

    print("KERNEL_OK")
</pallas_src>

<mosaic_0001>
module attributes {stable_mosaic.version = 11 : i64} {
  func.func @hidden_kernel(%arg0: memref<64x16xf32, #tpu.memory_space<vmem>>, %arg1: memref<16x32xbf16, #tpu.memory_space<vmem>>, %arg2: memref<1x32xf32, #tpu.memory_space<vmem>>, %arg3: memref<1x32xf32, #tpu.memory_space<vmem>>, %arg4: memref<1x32xf32, #tpu.memory_space<vmem>>, %arg5: memref<32x64xbf16, #tpu.memory_space<vmem>>, %arg6: memref<1x64xf32, #tpu.memory_space<vmem>>, %arg7: memref<1x64xf32, #tpu.memory_space<vmem>>, %arg8: memref<1x64xf32, #tpu.memory_space<vmem>>, %arg9: memref<64x128xbf16, #tpu.memory_space<vmem>>, %arg10: memref<1x128xf32, #tpu.memory_space<vmem>>, %arg11: memref<1x128xf32, #tpu.memory_space<vmem>>, %arg12: memref<1x128xf32, #tpu.memory_space<vmem>>, %arg13: memref<64x128xbf16, #tpu.memory_space<vmem>>) attributes {dimension_semantics = [], scalar_prefetch = 0 : i64, scratch_operands = 0 : i64, tpu.core_type = #tpu.core_type<tc>} {
    %c0 = arith.constant 0 : index
    %c0_0 = arith.constant 0 : index
    %0 = vector.load %arg0[%c0, %c0_0] : memref<64x16xf32, #tpu.memory_space<vmem>>, vector<64x16xf32>
    %1 = arith.truncf %0 : vector<64x16xf32> to vector<64x16xbf16>
    %c0_1 = arith.constant 0 : index
    %c0_2 = arith.constant 0 : index
    %2 = vector.load %arg1[%c0_1, %c0_2] : memref<16x32xbf16, #tpu.memory_space<vmem>>, vector<16x32xbf16>
    %cst = arith.constant dense<0.000000e+00> : vector<64x32xf32>
    %3 = tpu.matmul %1, %2, %cst {dimension_numbers = #tpu.dot_dimension_numbers<[1], [0], [0], [1], [0, 0, 1, 1], [], []>} : vector<64x16xbf16>, vector<16x32xbf16>, vector<64x32xf32> -> vector<64x32xf32>
    %c0_3 = arith.constant 0 : index
    %c0_4 = arith.constant 0 : index
    %4 = vector.load %arg2[%c0_3, %c0_4] : memref<1x32xf32, #tpu.memory_space<vmem>>, vector<1x32xf32>
    %5 = vector.broadcast %4 : vector<1x32xf32> to vector<64x32xf32>
    %6 = arith.addf %3, %5 : vector<64x32xf32>
    %c0_5 = arith.constant 0 : index
    %c0_6 = arith.constant 0 : index
    %7 = vector.load %arg3[%c0_5, %c0_6] : memref<1x32xf32, #tpu.memory_space<vmem>>, vector<1x32xf32>
    %c0_7 = arith.constant 0 : index
    %c0_8 = arith.constant 0 : index
    %8 = vector.load %arg4[%c0_7, %c0_8] : memref<1x32xf32, #tpu.memory_space<vmem>>, vector<1x32xf32>
    %cst_9 = arith.constant dense<0.000000e+00> : vector<32xf32>
    %9 = vector.multi_reduction <add>, %6, %cst_9 [0] : vector<64x32xf32> to vector<32xf32>
    %10 = vector.shape_cast %9 : vector<32xf32> to vector<1x32xf32>
    %11 = arith.mulf %6, %6 : vector<64x32xf32>
    %cst_10 = arith.constant dense<0.000000e+00> : vector<32xf32>
    %12 = vector.multi_reduction <add>, %11, %cst_10 [0] : vector<64x32xf32> to vector<32xf32>
    %13 = vector.shape_cast %12 : vector<32xf32> to vector<1x32xf32>
    %cst_11 = arith.constant 1.562500e-02 : f32
    %14 = vector.broadcast %cst_11 : f32 to vector<1x32xf32>
    %15 = arith.mulf %10, %14 : vector<1x32xf32>
    %cst_12 = arith.constant 1.562500e-02 : f32
    %16 = vector.broadcast %cst_12 : f32 to vector<1x32xf32>
    %17 = arith.mulf %13, %16 : vector<1x32xf32>
    %18 = arith.mulf %15, %15 : vector<1x32xf32>
    %19 = arith.subf %17, %18 : vector<1x32xf32>
    %cst_13 = arith.constant 0.000000e+00 : f32
    %20 = vector.broadcast %cst_13 : f32 to vector<1x32xf32>
    %21 = arith.maximumf %19, %20 : vector<1x32xf32>
    %cst_14 = arith.constant 9.99999974E-6 : f32
    %22 = vector.broadcast %cst_14 : f32 to vector<1x32xf32>
    %23 = arith.addf %21, %22 : vector<1x32xf32>
    %24 = math.rsqrt %23 : vector<1x32xf32>
    %25 = arith.mulf %24, %7 : vector<1x32xf32>
    %26 = vector.broadcast %15 : vector<1x32xf32> to vector<64x32xf32>
    %27 = arith.subf %6, %26 : vector<64x32xf32>
    %28 = vector.broadcast %25 : vector<1x32xf32> to vector<64x32xf32>
    %29 = arith.mulf %27, %28 : vector<64x32xf32>
    %30 = vector.broadcast %8 : vector<1x32xf32> to vector<64x32xf32>
    %31 = arith.addf %29, %30 : vector<64x32xf32>
    %cst_15 = arith.constant 0.000000e+00 : f32
    %32 = vector.broadcast %cst_15 : f32 to vector<64x32xf32>
    %33 = arith.cmpf ogt, %31, %32 : vector<64x32xf32>
    %cst_16 = arith.constant 1.000000e-01 : f32
    %34 = vector.broadcast %cst_16 : f32 to vector<64x32xf32>
    %35 = arith.mulf %34, %31 : vector<64x32xf32>
    %36 = arith.select %33, %31, %35 : vector<64x32xi1>, vector<64x32xf32>
    %37 = arith.truncf %36 : vector<64x32xf32> to vector<64x32xbf16>
    %c0_17 = arith.constant 0 : index
    %c0_18 = arith.constant 0 : index
    %38 = vector.load %arg5[%c0_17, %c0_18] : memref<32x64xbf16, #tpu.memory_space<vmem>>, vector<32x64xbf16>
    %cst_19 = arith.constant dense<0.000000e+00> : vector<64x64xf32>
    %39 = tpu.matmul %37, %38, %cst_19 {dimension_numbers = #tpu.dot_dimension_numbers<[1], [0], [0], [1], [0, 0, 1, 1], [], []>} : vector<64x32xbf16>, vector<32x64xbf16>, vector<64x64xf32> -> vector<64x64xf32>
    %c0_20 = arith.constant 0 : index
    %c0_21 = arith.constant 0 : index
    %40 = vector.load %arg6[%c0_20, %c0_21] : memref<1x64xf32, #tpu.memory_space<vmem>>, vector<1x64xf32>
    %41 = vector.broadcast %40 : vector<1x64xf32> to vector<64x64xf32>
    %42 = arith.addf %39, %41 : vector<64x64xf32>
    %c0_22 = arith.constant 0 : index
    %c0_23 = arith.constant 0 : index
    %43 = vector.load %arg7[%c0_22, %c0_23] : memref<1x64xf32, #tpu.memory_space<vmem>>, vector<1x64xf32>
    %c0_24 = arith.constant 0 : index
    %c0_25 = arith.constant 0 : index
    %44 = vector.load %arg8[%c0_24, %c0_25] : memref<1x64xf32, #tpu.memory_space<vmem>>, vector<1x64xf32>
    %cst_26 = arith.constant dense<0.000000e+00> : vector<64xf32>
    %45 = vector.multi_reduction <add>, %42, %cst_26 [0] : vector<64x64xf32> to vector<64xf32>
    %46 = vector.shape_cast %45 : vector<64xf32> to vector<1x64xf32>
    %47 = arith.mulf %42, %42 : vector<64x64xf32>
    %cst_27 = arith.constant dense<0.000000e+00> : vector<64xf32>
    %48 = vector.multi_reduction <add>, %47, %cst_27 [0] : vector<64x64xf32> to vector<64xf32>
    %49 = vector.shape_cast %48 : vector<64xf32> to vector<1x64xf32>
    %cst_28 = arith.constant 1.562500e-02 : f32
    %50 = vector.broadcast %cst_28 : f32 to vector<1x64xf32>
    %51 = arith.mulf %46, %50 : vector<1x64xf32>
    %cst_29 = arith.constant 1.562500e-02 : f32
    %52 = vector.broadcast %cst_29 : f32 to vector<1x64xf32>
    %53 = arith.mulf %49, %52 : vector<1x64xf32>
    %54 = arith.mulf %51, %51 : vector<1x64xf32>
    %55 = arith.subf %53, %54 : vector<1x64xf32>
    %cst_30 = arith.constant 0.000000e+00 : f32
    %56 = vector.broadcast %cst_30 : f32 to vector<1x64xf32>
    %57 = arith.maximumf %55, %56 : vector<1x64xf32>
    %cst_31 = arith.constant 9.99999974E-6 : f32
    %58 = vector.broadcast %cst_31 : f32 to vector<1x64xf32>
    %59 = arith.addf %57, %58 : vector<1x64xf32>
    %60 = math.rsqrt %59 : vector<1x64xf32>
    %61 = arith.mulf %60, %43 : vector<1x64xf32>
    %62 = vector.broadcast %51 : vector<1x64xf32> to vector<64x64xf32>
    %63 = arith.subf %42, %62 : vector<64x64xf32>
    %64 = vector.broadcast %61 : vector<1x64xf32> to vector<64x64xf32>
    %65 = arith.mulf %63, %64 : vector<64x64xf32>
    %66 = vector.broadcast %44 : vector<1x64xf32> to vector<64x64xf32>
    %67 = arith.addf %65, %66 : vector<64x64xf32>
    %cst_32 = arith.constant 0.000000e+00 : f32
    %68 = vector.broadcast %cst_32 : f32 to vector<64x64xf32>
    %69 = arith.cmpf ogt, %67, %68 : vector<64x64xf32>
    %cst_33 = arith.constant 2.000000e-01 : f32
    %70 = vector.broadcast %cst_33 : f32 to vector<64x64xf32>
    %71 = arith.mulf %70, %67 : vector<64x64xf32>
    %72 = arith.select %69, %67, %71 : vector<64x64xi1>, vector<64x64xf32>
    %73 = arith.truncf %72 : vector<64x64xf32> to vector<64x64xbf16>
    %c0_34 = arith.constant 0 : index
    %c0_35 = arith.constant 0 : index
    %74 = vector.load %arg9[%c0_34, %c0_35] : memref<64x128xbf16, #tpu.memory_space<vmem>>, vector<64x128xbf16>
    %cst_36 = arith.constant dense<0.000000e+00> : vector<64x128xf32>
    %75 = tpu.matmul %73, %74, %cst_36 {dimension_numbers = #tpu.dot_dimension_numbers<[1], [0], [0], [1], [0, 0, 1, 1], [], []>} : vector<64x64xbf16>, vector<64x128xbf16>, vector<64x128xf32> -> vector<64x128xf32>
    %c0_37 = arith.constant 0 : index
    %c0_38 = arith.constant 0 : index
    %76 = vector.load %arg10[%c0_37, %c0_38] : memref<1x128xf32, #tpu.memory_space<vmem>>, vector<1x128xf32>
    %77 = vector.broadcast %76 : vector<1x128xf32> to vector<64x128xf32>
    %78 = arith.addf %75, %77 : vector<64x128xf32>
    %c0_39 = arith.constant 0 : index
    %c0_40 = arith.constant 0 : index
    %79 = vector.load %arg11[%c0_39, %c0_40] : memref<1x128xf32, #tpu.memory_space<vmem>>, vector<1x128xf32>
    %c0_41 = arith.constant 0 : index
    %c0_42 = arith.constant 0 : index
    %80 = vector.load %arg12[%c0_41, %c0_42] : memref<1x128xf32, #tpu.memory_space<vmem>>, vector<1x128xf32>
    %cst_43 = arith.constant dense<0.000000e+00> : vector<128xf32>
    %81 = vector.multi_reduction <add>, %78, %cst_43 [0] : vector<64x128xf32> to vector<128xf32>
    %82 = vector.shape_cast %81 : vector<128xf32> to vector<1x128xf32>
    %83 = arith.mulf %78, %78 : vector<64x128xf32>
    %cst_44 = arith.constant dense<0.000000e+00> : vector<128xf32>
    %84 = vector.multi_reduction <add>, %83, %cst_44 [0] : vector<64x128xf32> to vector<128xf32>
    %85 = vector.shape_cast %84 : vector<128xf32> to vector<1x128xf32>
    %cst_45 = arith.constant 1.562500e-02 : f32
    %86 = vector.broadcast %cst_45 : f32 to vector<1x128xf32>
    %87 = arith.mulf %82, %86 : vector<1x128xf32>
    %cst_46 = arith.constant 1.562500e-02 : f32
    %88 = vector.broadcast %cst_46 : f32 to vector<1x128xf32>
    %89 = arith.mulf %85, %88 : vector<1x128xf32>
    %90 = arith.mulf %87, %87 : vector<1x128xf32>
    %91 = arith.subf %89, %90 : vector<1x128xf32>
    %cst_47 = arith.constant 0.000000e+00 : f32
    %92 = vector.broadcast %cst_47 : f32 to vector<1x128xf32>
    %93 = arith.maximumf %91, %92 : vector<1x128xf32>
    %cst_48 = arith.constant 9.99999974E-6 : f32
    %94 = vector.broadcast %cst_48 : f32 to vector<1x128xf32>
    %95 = arith.addf %93, %94 : vector<1x128xf32>
    %96 = math.rsqrt %95 : vector<1x128xf32>
    %97 = arith.mulf %96, %79 : vector<1x128xf32>
    %98 = vector.broadcast %87 : vector<1x128xf32> to vector<64x128xf32>
    %99 = arith.subf %78, %98 : vector<64x128xf32>
    %100 = vector.broadcast %97 : vector<1x128xf32> to vector<64x128xf32>
    %101 = arith.mulf %99, %100 : vector<64x128xf32>
    %102 = vector.broadcast %80 : vector<1x128xf32> to vector<64x128xf32>
    %103 = arith.addf %101, %102 : vector<64x128xf32>
    %cst_49 = arith.constant 0.000000e+00 : f32
    %104 = vector.broadcast %cst_49 : f32 to vector<64x128xf32>
    %105 = arith.cmpf ogt, %103, %104 : vector<64x128xf32>
    %cst_50 = arith.constant 3.000000e-01 : f32
    %106 = vector.broadcast %cst_50 : f32 to vector<64x128xf32>
    %107 = arith.mulf %106, %103 : vector<64x128xf32>
    %108 = arith.select %105, %103, %107 : vector<64x128xi1>, vector<64x128xf32>
    %109 = arith.truncf %108 : vector<64x128xf32> to vector<64x128xbf16>
    %c0_51 = arith.constant 0 : index
    %c0_52 = arith.constant 0 : index
    %110 = vector.load %arg13[%c0_51, %c0_52] : memref<64x128xbf16, #tpu.memory_space<vmem>>, vector<64x128xbf16>
    tpu.vector_store %arg13[%c0_51, %c0_52], %109 {strides = array<i32>} : memref<64x128xbf16, #tpu.memory_space<vmem>>, vector<64x128xbf16>,
    return
  }
}

module attributes {stable_mosaic.version = 11 : i64} {
  func.func @output_kernel(%arg0: i32, %arg1: memref<64x128xbf16, #tpu.memory_space<vmem>>, %arg2: memref<128x784xbf16, #tpu.memory_space<vmem>>, %arg3: memref<1x784xf32, #tpu.memory_space<vmem>>, %arg4: memref<64x784xf32, #tpu.memory_space<vmem>>) attributes {dimension_semantics = [#tpu.dimension_semantics<parallel>], iteration_bounds = array<i64: 1>, scalar_prefetch = 0 : i64, scratch_operands = 0 : i64, tpu.core_type = #tpu.core_type<tc>, window_params = [{transform_indices = @transform_0, window_bounds = array<i64: 64, 128>}, {pipeline_mode = #tpu.pipeline_mode<synchronous>, transform_indices = @transform_1, window_bounds = array<i64: 128, 784>}, {pipeline_mode = #tpu.pipeline_mode<synchronous>, transform_indices = @transform_2, window_bounds = array<i64: 1, 784>}, {transform_indices = @transform_3, window_bounds = array<i64: 64, 784>}]} {
    %c0 = arith.constant 0 : index
    %c0_0 = arith.constant 0 : index
    %0 = vector.load %arg1[%c0, %c0_0] : memref<64x128xbf16, #tpu.memory_space<vmem>>, vector<64x128xbf16>
    %c0_1 = arith.constant 0 : index
    %c0_2 = arith.constant 0 : index
    %1 = vector.load %arg2[%c0_1, %c0_2] : memref<128x784xbf16, #tpu.memory_space<vmem>>, vector<128x784xbf16>
    %cst = arith.constant dense<0.000000e+00> : vector<64x784xf32>
    %2 = tpu.matmul %0, %1, %cst {dimension_numbers = #tpu.dot_dimension_numbers<[1], [0], [0], [1], [0, 0, 1, 1], [], []>} : vector<64x128xbf16>, vector<128x784xbf16>, vector<64x784xf32> -> vector<64x784xf32>
    %c0_3 = arith.constant 0 : index
    %c0_4 = arith.constant 0 : index
    %3 = vector.load %arg3[%c0_3, %c0_4] : memref<1x784xf32, #tpu.memory_space<vmem>>, vector<1x784xf32>
    %4 = vector.broadcast %3 : vector<1x784xf32> to vector<64x784xf32>
    %5 = arith.addf %2, %4 : vector<64x784xf32>
    %6 = math.tanh %5 : vector<64x784xf32>
    %c0_5 = arith.constant 0 : index
    %c0_6 = arith.constant 0 : index
    %7 = vector.load %arg4[%c0_5, %c0_6] : memref<64x784xf32, #tpu.memory_space<vmem>>, vector<64x784xf32>
    tpu.vector_store %arg4[%c0_5, %c0_6], %6 {strides = array<i32>} : memref<64x784xf32, #tpu.memory_space<vmem>>, vector<64x784xf32>,
    return
  }
  func.func @transform_0(%arg0: i32) -> (i32, i32) {
    %c0_i32 = arith.constant 0 : i32
    %c0_i32_0 = arith.constant 0 : i32
    return %arg0, %c0_i32 : i32, i32
  }
  func.func @transform_1(%arg0: i32) -> (i32, i32) {
    %c0_i32 = arith.constant 0 : i32
    %c0_i32_0 = arith.constant 0 : i32
    %c0_i32_1 = arith.constant 0 : i32
    return %c0_i32, %c0_i32_0 : i32, i32
  }
  func.func @transform_2(%arg0: i32) -> (i32, i32) {
    %c0_i32 = arith.constant 0 : i32
    %c0_i32_0 = arith.constant 0 : i32
    %c0_i32_1 = arith.constant 0 : i32
    return %c0_i32, %c0_i32_0 : i32, i32
  }
  func.func @transform_3(%arg0: i32) -> (i32, i32) {
    %c0_i32 = arith.constant 0 : i32
    %c0_i32_0 = arith.constant 0 : i32
    return %arg0, %c0_i32 : i32, i32
  }
}

</mosaic_0001>

<llo_original>
// kernel: forward.2
$region0: #{forward.2}
  #allocation0 [shape = 'u32[]', space=smem, size = 0x4, offset = 0x4, fixed_abs, tag = 'smem constant byte address 0x4 - core index']
  #allocation1 [shape = 'u32[144,128]{1,0:T(1,128)}', space=vmem, size = 0x12000, scoped, tag = 'internal scratch']
  %s0 = inlined_call_operand.vmem [shape: f32[64,16], index: 0, kind: input, shape index: {}]
  %s1 = inlined_call_operand.vmem [shape: bf16[16,32], index: 1, kind: input, shape index: {}]
  %s2 = inlined_call_operand.vmem [shape: f32[1,32], index: 2, kind: input, shape index: {}]
  %s3 = inlined_call_operand.vmem [shape: f32[1,32], index: 3, kind: input, shape index: {}]
  %s4 = inlined_call_operand.vmem [shape: f32[1,32], index: 4, kind: input, shape index: {}]
  %s5 = inlined_call_operand.vmem [shape: bf16[32,64], index: 5, kind: input, shape index: {}]
  %s6 = inlined_call_operand.vmem [shape: f32[1,64], index: 6, kind: input, shape index: {}]
  %s7 = inlined_call_operand.vmem [shape: f32[1,64], index: 7, kind: input, shape index: {}]
  %s8 = inlined_call_operand.vmem [shape: f32[1,64], index: 8, kind: input, shape index: {}]
  %s9 = inlined_call_operand.vmem [shape: bf16[64,128], index: 9, kind: input, shape index: {}]
  %s10 = inlined_call_operand.vmem [shape: f32[1,128], index: 10, kind: input, shape index: {}]
  %s11 = inlined_call_operand.vmem [shape: f32[1,128], index: 11, kind: input, shape index: {}]
  %s12 = inlined_call_operand.vmem [shape: f32[1,128], index: 12, kind: input, shape index: {}]
  %s13 = inlined_call_operand.vmem [shape: bf16[64,128], index: 13, kind: output, shape index: {}]
  %s14 = sld [smem:[#allocation0]]
  $region62: #{forward.2} parent=0
    _
  %s16 = ssub.s32 1, %s14
  %s17 = scalar_select 0, %s16, %s14
  // Predicated region
  $region2: #{forward.2} parent=0 // pred_check
    _
  $region3: #{forward.2} parent=0 // pred_check_branch
    %19 = sbr.rel (0) target = $region5
  $region4: #{forward.2} parent=0 // pred_region
    _
  $region5: #{forward.2} parent=0 // pred_fallthru
    _
  // Predicated region
  $region6: #{forward.2} parent=0 // pred_check
    _
  $region7: #{forward.2} parent=0 // pred_check_branch
    %21 = sbr.rel (0) target = $region9
  $region8: #{forward.2} parent=0 // pred_region
    _
  $region9: #{forward.2} parent=0 // pred_fallthru
    _
  // Predicated region
  $region10: #{forward.2} parent=0 // pred_check
    _
  $region11: #{forward.2} parent=0 // pred_check_branch
    %23 = sbr.rel (0) target = $region13
  $region12: #{forward.2} parent=0 // pred_region
    _
  $region13: #{forward.2} parent=0 // pred_fallthru
    _
  // Predicated region
  $region14: #{forward.2} parent=0 // pred_check
    _
  $region15: #{forward.2} parent=0 // pred_check_branch
    %25 = sbr.rel (0) target = $region17
  $region16: #{forward.2} parent=0 // pred_region
    _
  $region17: #{forward.2} parent=0 // pred_fallthru
    _
  // Predicated region
  $region18: #{forward.2} parent=0 // pred_check
    _
  $region19: #{forward.2} parent=0 // pred_check_branch
    %27 = sbr.rel (0) target = $region21
  $region20: #{forward.2} parent=0 // pred_region
    _
  $region21: #{forward.2} parent=0 // pred_fallthru
    _
  // Predicated region
  $region22: #{forward.2} parent=0 // pred_check
    _
  $region23: #{forward.2} parent=0 // pred_check_branch
    %29 = sbr.rel (0) target = $region25
  $region24: #{forward.2} parent=0 // pred_region
    _
  $region25: #{forward.2} parent=0 // pred_fallthru
    _
  // Predicated region
  $region26: #{forward.2} parent=0 // pred_check
    _
  $region27: #{forward.2} parent=0 // pred_check_branch
    %31 = sbr.rel (0) target = $region29
  $region28: #{forward.2} parent=0 // pred_region
    _
  $region29: #{forward.2} parent=0 // pred_fallthru
    _
  // Predicated region
  $region30: #{forward.2} parent=0 // pred_check
    _
  $region31: #{forward.2} parent=0 // pred_check_branch
    %33 = sbr.rel (0) target = $region33
  $region32: #{forward.2} parent=0 // pred_region
    _
  $region33: #{forward.2} parent=0 // pred_fallthru
    _
  // Predicated region
  $region34: #{forward.2} parent=0 // pred_check
    _
  $region35: #{forward.2} parent=0 // pred_check_branch
    %35 = sbr.rel (0) target = $region37
  $region36: #{forward.2} parent=0 // pred_region
    _
  $region37: #{forward.2} parent=0 // pred_fallthru
    _
  // Predicated region
  $region38: #{forward.2} parent=0 // pred_check
    _
  $region39: #{forward.2} parent=0 // pred_check_branch
    %37 = sbr.rel (0) target = $region41
  $region40: #{forward.2} parent=0 // pred_region
    _
  $region41: #{forward.2} parent=0 // pred_fallthru
    _
  // Predicated region
  $region42: #{forward.2} parent=0 // pred_check
    _
  $region43: #{forward.2} parent=0 // pred_check_branch
    %39 = sbr.rel (0) target = $region45
  $region44: #{forward.2} parent=0 // pred_region
    _
  $region45: #{forward.2} parent=0 // pred_fallthru
    _
  // Predicated region
  $region46: #{forward.2} parent=0 // pred_check
    _
  $region47: #{forward.2} parent=0 // pred_check_branch
    %41 = sbr.rel (0) target = $region49
  $region48: #{forward.2} parent=0 // pred_region
    _
  $region49: #{forward.2} parent=0 // pred_fallthru
    _
  // Predicated region
  $region50: #{forward.2} parent=0 // pred_check
    _
  $region51: #{forward.2} parent=0 // pred_check_branch
    %43 = sbr.rel (0) target = $region53
  $region52: #{forward.2} parent=0 // pred_region
    _
  $region53: #{forward.2} parent=0 // pred_fallthru
    _
  %v45 = vld [vmem:[%s0] sm:$0xff]
  %v46 = vld [vmem:[%s0 + $0x8] sm:$0xff]
  %v47 = vld [vmem:[%s0 + $0x10] sm:$0xff]
  %v48 = vld [vmem:[%s0 + $0x18] sm:$0xff]
  %v49 = vld [vmem:[%s0 + $0x20] sm:$0xff]
  %v50 = vld [vmem:[%s0 + $0x28] sm:$0xff]
  %v51 = vld [vmem:[%s0 + $0x30] sm:$0xff]
  %v52 = vld [vmem:[%s0 + $0x38] sm:$0xff]
  %v53 = vpack.c.bf16 %v46, %v45
  %v54 = vpack.c.bf16 %v48, %v47
  %v55 = vpack.c.bf16 %v50, %v49
  %v56 = vpack.c.bf16 %v52, %v51
  %v57 = vld [vmem:[%s1] sm:$0xf]
  %v58 = vld [vmem:[%s1 + $0x4] sm:$0xf]
  %v59 = vld [vmem:[%s2] sm:$0x1]
  %v61 = vlaneseq
  %v62 = vshrl.u32 %v61, 7
  %v63 = vsub.s32 0, %v62
  %v64 = vrot.slane %v59, %v63
  %v68 = vunpack.c.l.b16 %v57
  %v69 = vunpack.c.l.b16 %v58
  %v70 = vpack.c.b16 %v69, %v68
  %vm72 = vcmask 130048
  %v74 = vsel %vm72, %v53, 0
  %v77 = vsel %vm72, %v54, 0
  %v80 = vsel %vm72, %v55, 0
  %v83 = vsel %vm72, %v56, 0
  %85 = vmatprep.subr.bf16.mxu0 0
  %86 = vmatpush1.bf16.msra.mxu0 %v70
  %87 = vmatprep.subr.bf16.mxu0 0
  %88 = vmatpush1.bf16.msra.mxu0 0
  %89 = vmatprep.subr.bf16.mxu0 0
  %90 = vmatpush1.bf16.msra.mxu0 0
  %91 = vmatprep.subr.bf16.mxu0 0
  %92 = vmatpush1.bf16.msra.mxu0 0
  %93 = vmatprep.subr.bf16.mxu0 0
  %94 = vmatpush1.bf16.msra.mxu0 0
  %95 = vmatprep.subr.bf16.mxu0 0
  %96 = vmatpush1.bf16.msra.mxu0 0
  %97 = vmatprep.subr.bf16.mxu0 0
  %98 = vmatpush1.bf16.msra.mxu0 0
  %99 = vmatprep.subr.bf16.mxu0 0
  %100 = vmatpush1.bf16.msra.mxu0 0
  %101 = vmatprep.subr.bf16.mxu0 0
  %102 = vmatpush1.bf16.msra.mxu0 0
  %103 = vmatprep.subr.bf16.mxu0 0
  %104 = vmatpush1.bf16.msra.mxu0 0
  %105 = vmatprep.subr.bf16.mxu0 0
  %106 = vmatpush1.bf16.msra.mxu0 0
  %107 = vmatprep.subr.bf16.mxu0 0
  %108 = vmatpush1.bf16.msra.mxu0 0
  %109 = vmatprep.subr.bf16.mxu0 0
  %110 = vmatpush1.bf16.msra.mxu0 0
  %111 = vmatprep.subr.bf16.mxu0 0
  %112 = vmatpush1.bf16.msra.mxu0 0
  %113 = vmatprep.subr.bf16.mxu0 0
  %114 = vmatpush1.bf16.msra.mxu0 0
  %115 = vmatprep.subr.bf16.mxu0 0
  %116 = vmatpush1.bf16.msra.mxu0 0
  %117 = vmatprep.mubr.bf16.mxu0 0
  %118 = vmatmul.mubr.bf16.gmra.mrb[0].mxu0 %v74
  %v119 = vpop.f32.mrb[0].mxu0
  %v120 = vadd.f32 %v64, %v119
  %v121 = vpop.f32.mrb[0].mxu0
  %v122 = vpop.f32.mrb[0].mxu0
  %v123 = vadd.f32 %v64, %v122
  %v124 = vpop.f32.mrb[0].mxu0
  %125 = vmatprep.mubr.bf16.mxu0 0
  %126 = vmatmul.mubr.bf16.gmra.mrb[0].mxu0 %v77
  %v127 = vpop.f32.mrb[0].mxu0
  %v128 = vadd.f32 %v64, %v127
  %v129 = vpop.f32.mrb[0].mxu0
  %v130 = vpop.f32.mrb[0].mxu0
  %v131 = vadd.f32 %v64, %v130
  %v132 = vpop.f32.mrb[0].mxu0
  %133 = vmatprep.mubr.bf16.mxu0 0
  %134 = vmatmul.mubr.bf16.gmra.mrb[0].mxu0 %v80
  %v135 = vpop.f32.mrb[0].mxu0
  %v136 = vadd.f32 %v64, %v135
  %v137 = vpop.f32.mrb[0].mxu0
  %v138 = vpop.f32.mrb[0].mxu0
  %v139 = vadd.f32 %v64, %v138
  %v140 = vpop.f32.mrb[0].mxu0
  %141 = vmatprep.mubr.bf16.mxu0 0
  %142 = vmatmul.mubr.bf16.gmra.mrb[0].mxu0 %v83
  %v143 = vpop.f32.mrb[0].mxu0
  %v144 = vadd.f32 %v64, %v143
  %v145 = vpop.f32.mrb[0].mxu0
  %v146 = vpop.f32.mrb[0].mxu0
  %v147 = vadd.f32 %v64, %v146
  %v148 = vpop.f32.mrb[0].mxu0
  %149 = vdwg.mxu0
  %v150 = vld [vmem:[%s3] sm:$0x1]
  %v151 = vld [vmem:[%s4] sm:$0x1]
  %vm152 = vcmask 261120
  %v153 = vsel %vm152, %v120, 0.0
  %v154 = vsel %vm152, %v123, 0.0
  %v155 = vadd.f32 %v153, %v154
  %v156 = vsel %vm152, %v128, 0.0
  %v157 = vadd.f32 %v155, %v156
  %v158 = vsel %vm152, %v131, 0.0
  %v159 = vadd.f32 %v157, %v158
  %v160 = vsel %vm152, %v136, 0.0
  %v161 = vadd.f32 %v159, %v160
  %v162 = vsel %vm152, %v139, 0.0
  %v163 = vadd.f32 %v161, %v162
  %v164 = vsel %vm152, %v144, 0.0
  %v165 = vadd.f32 %v163, %v164
  %v166 = vsel %vm152, %v147, 0.0
  %v167 = vadd.f32 %v165, %v166
  %v168 = vrot.slane %v167, 4
  %v169 = vadd.f32 %v167, %v168
  %v170 = vrot.slane %v169, 2
  %v171 = vadd.f32 %v169, %v170
  %v172 = vrot.slane %v171, 1
  %v173 = vadd.f32 %v171, %v172
  %v174 = vmul.f32 %v120, %v120
  %v175 = vmul.f32 %v123, %v123
  %v176 = vmul.f32 %v128, %v128
  %v177 = vmul.f32 %v131, %v131
  %v178 = vmul.f32 %v136, %v136
  %v179 = vmul.f32 %v139, %v139
  %v180 = vmul.f32 %v144, %v144
  %v181 = vmul.f32 %v147, %v147
  %v182 = vsel %vm152, %v174, 0.0
  %v183 = vsel %vm152, %v175, 0.0
  %v184 = vadd.f32 %v182, %v183
  %v185 = vsel %vm152, %v176, 0.0
  %v186 = vadd.f32 %v184, %v185
  %v187 = vsel %vm152, %v177, 0.0
  %v188 = vadd.f32 %v186, %v187
  %v189 = vsel %vm152, %v178, 0.0
  %v190 = vadd.f32 %v188, %v189
  %v191 = vsel %vm152, %v179, 0.0
  %v192 = vadd.f32 %v190, %v191
  %v193 = vsel %vm152, %v180, 0.0
  %v194 = vadd.f32 %v192, %v193
  %v195 = vsel %vm152, %v181, 0.0
  %v196 = vadd.f32 %v194, %v195
  %v197 = vrot.slane %v196, 4
  %v198 = vadd.f32 %v196, %v197
  %v199 = vrot.slane %v198, 2
  %v200 = vadd.f32 %v198, %v199
  %v201 = vrot.slane %v200, 1
  %v202 = vadd.f32 %v200, %v201
  %v203 = vmul.f32 %v173, 0.015625
  %v204 = vmul.f32 %v202, 0.015625
  %v205 = vmul.f32 %v203, %v203
  %v206 = vsub.f32 %v204, %v205
  %v207 = vmax.f32 %v206, 0.0
  %v208 = vadd.f32 %v207, 1e-05
  %v209 = vrsqrt.pop %v208
  %v210 = vmul.f32 %v209, %v150
  %v211 = vsub.f32 %v120, %v203
  %v212 = vsub.f32 %v123, %v203
  %v213 = vsub.f32 %v128, %v203
  %v214 = vsub.f32 %v131, %v203
  %v215 = vsub.f32 %v136, %v203
  %v216 = vsub.f32 %v139, %v203
  %v217 = vsub.f32 %v144, %v203
  %v218 = vsub.f32 %v147, %v203
  %v219 = vlaneseq
  %v220 = vshrl.u32 %v219, 7
  %v221 = vsub.s32 0, %v220
  %v222 = vrot.slane %v210, %v221
  %v223 = vmul.f32 %v211, %v222
  %v224 = vmul.f32 %v212, %v222
  %v225 = vmul.f32 %v213, %v222
  %v226 = vmul.f32 %v214, %v222
  %v227 = vmul.f32 %v215, %v222
  %v228 = vmul.f32 %v216, %v222
  %v229 = vmul.f32 %v217, %v222
  %v230 = vmul.f32 %v218, %v222
  %v232 = vlaneseq
  %v233 = vshrl.u32 %v232, 7
  %v234 = vsub.s32 0, %v233
  %v235 = vrot.slane %v151, %v234
  %v237 = vadd.f32 %v223, %v235
  %v238 = vadd.f32 %v224, %v235
  %v239 = vadd.f32 %v225, %v235
  %v240 = vadd.f32 %v226, %v235
  %v241 = vadd.f32 %v227, %v235
  %v242 = vadd.f32 %v228, %v235
  %v243 = vadd.f32 %v229, %v235
  %v244 = vadd.f32 %v230, %v235
  %vm245 = vcmp.gt.f32.partialorder %v237, 0.0
  %vm246 = vcmp.gt.f32.partialorder %v238, 0.0
  %vm247 = vcmp.gt.f32.partialorder %v239, 0.0
  %vm248 = vcmp.gt.f32.partialorder %v240, 0.0
  %vm249 = vcmp.gt.f32.partialorder %v241, 0.0
  %vm250 = vcmp.gt.f32.partialorder %v242, 0.0
  %vm251 = vcmp.gt.f32.partialorder %v243, 0.0
  %vm252 = vcmp.gt.f32.partialorder %v244, 0.0
  %v253 = vmul.f32 %v237, 0.1
  %v254 = vmul.f32 %v238, 0.1
  %v255 = vmul.f32 %v239, 0.1
  %v256 = vmul.f32 %v240, 0.1
  %v257 = vmul.f32 %v241, 0.1
  %v258 = vmul.f32 %v242, 0.1
  %v259 = vmul.f32 %v243, 0.1
  %v260 = vmul.f32 %v244, 0.1
  %v261 = vsel %vm245, %v237, %v253
  %v262 = vsel %vm246, %v238, %v254
  %v263 = vsel %vm247, %v239, %v255
  %v264 = vsel %vm248, %v240, %v256
  %v265 = vsel %vm249, %v241, %v257
  %v266 = vsel %vm250, %v242, %v258
  %v267 = vsel %vm251, %v243, %v259
  %v268 = vsel %vm252, %v244, %v260
  %v269 = vpack.c.bf16 %v262, %v261
  %v270 = vpack.c.bf16 %v264, %v263
  %v271 = vpack.c.bf16 %v266, %v265
  %v272 = vpack.c.bf16 %v268, %v267
  %v273 = vld [vmem:[%s5] sm:$0xf]
  %v274 = vld [vmem:[%s5 + $0x4] sm:$0xf]
  %v275 = vld [vmem:[%s5 + $0x8] sm:$0xf]
  %v276 = vld [vmem:[%s5 + $0xc] sm:$0xf]
  %v277 = vld [vmem:[%s6] sm:$0x1]
  %v279 = vlaneseq
  %v280 = vshrl.u32 %v279, 7
  %v281 = vsub.s32 0, %v280
  %v282 = vrot.slane %v277, %v281
  %v288 = vunpack.c.l.b16 %v273
  %v289 = vunpack.c.l.b16 %v274
  %v290 = vunpack.c.l.b16 %v275
  %v291 = vunpack.c.l.b16 %v276
  %v292 = vpack.c.b16 %v289, %v288
  %v293 = vpack.c.b16 %v291, %v290
  %v297 = vsel %vm152, %v269, 0
  %v300 = vsel %vm152, %v270, 0
  %v303 = vsel %vm152, %v271, 0
  %v306 = vsel %vm152, %v272, 0
  %308 = vmatprep.subr.bf16.mxu0 0
  %309 = vmatpush1.bf16.msra.mxu0 %v292
  %310 = vmatprep.subr.bf16.mxu0 0
  %311 = vmatpush1.bf16.msra.mxu0 %v293
  %312 = vmatprep.subr.bf16.mxu0 0
  %313 = vmatpush1.bf16.msra.mxu0 0
  %314 = vmatprep.subr.bf16.mxu0 0
  %315 = vmatpush1.bf16.msra.mxu0 0
  %316 = vmatprep.subr.bf16.mxu0 0
  %317 = vmatpush1.bf16.msra.mxu0 0
  %318 = vmatprep.subr.bf16.mxu0 0
  %319 = vmatpush1.bf16.msra.mxu0 0
  %320 = vmatprep.subr.bf16.mxu0 0
  %321 = vmatpush1.bf16.msra.mxu0 0
  %322 = vmatprep.subr.bf16.mxu0 0
  %323 = vmatpush1.bf16.msra.mxu0 0
  %324 = vmatprep.subr.bf16.mxu0 0
  %325 = vmatpush1.bf16.msra.mxu0 0
  %326 = vmatprep.subr.bf16.mxu0 0
  %327 = vmatpush1.bf16.msra.mxu0 0
  %328 = vmatprep.subr.bf16.mxu0 0
  %329 = vmatpush1.bf16.msra.mxu0 0
  %330 = vmatprep.subr.bf16.mxu0 0
  %331 = vmatpush1.bf16.msra.mxu0 0
  %332 = vmatprep.subr.bf16.mxu0 0
  %333 = vmatpush1.bf16.msra.mxu0 0
  %334 = vmatprep.subr.bf16.mxu0 0
  %335 = vmatpush1.bf16.msra.mxu0 0
  %336 = vmatprep.subr.bf16.mxu0 0
  %337 = vmatpush1.bf16.msra.mxu0 0
  %338 = vmatprep.subr.bf16.mxu0 0
  %339 = vmatpush1.bf16.msra.mxu0 0
  %340 = vmatprep.mubr.bf16.mxu0 0
  %341 = vmatmul.mubr.bf16.gmra.mrb[0].mxu0 %v297
  %v342 = vpop.f32.mrb[0].mxu0
  %v343 = vadd.f32 %v282, %v342
  %v344 = vpop.f32.mrb[0].mxu0
  %v345 = vpop.f32.mrb[0].mxu0
  %v346 = vadd.f32 %v282, %v345
  %v347 = vpop.f32.mrb[0].mxu0
  %348 = vmatprep.mubr.bf16.mxu0 0
  %349 = vmatmul.mubr.bf16.gmra.mrb[0].mxu0 %v300
  %v350 = vpop.f32.mrb[0].mxu0
  %v351 = vadd.f32 %v282, %v350
  %v352 = vpop.f32.mrb[0].mxu0
  %v353 = vpop.f32.mrb[0].mxu0
  %v354 = vadd.f32 %v282, %v353
  %v355 = vpop.f32.mrb[0].mxu0
  %356 = vmatprep.mubr.bf16.mxu0 0
  %357 = vmatmul.mubr.bf16.gmra.mrb[0].mxu0 %v303
  %v358 = vpop.f32.mrb[0].mxu0
  %v359 = vadd.f32 %v282, %v358
  %v360 = vpop.f32.mrb[0].mxu0
  %v361 = vpop.f32.mrb[0].mxu0
  %v362 = vadd.f32 %v282, %v361
  %v363 = vpop.f32.mrb[0].mxu0
  %364 = vmatprep.mubr.bf16.mxu0 0
  %365 = vmatmul.mubr.bf16.gmra.mrb[0].mxu0 %v306
  %v366 = vpop.f32.mrb[0].mxu0
  %v367 = vadd.f32 %v282, %v366
  %v368 = vpop.f32.mrb[0].mxu0
  %v369 = vpop.f32.mrb[0].mxu0
  %v370 = vadd.f32 %v282, %v369
  %v371 = vpop.f32.mrb[0].mxu0
  %372 = vdwg.mxu0
  %v373 = vld [vmem:[%s7] sm:$0x1]
  %v374 = vld [vmem:[%s8] sm:$0x1]
  %vm375 = vcmask 523264
  %v376 = vsel %vm375, %v343, 0.0
  %v377 = vsel %vm375, %v346, 0.0
  %v378 = vadd.f32 %v376, %v377
  %v379 = vsel %vm375, %v351, 0.0
  %v380 = vadd.f32 %v378, %v379
  %v381 = vsel %vm375, %v354, 0.0
  %v382 = vadd.f32 %v380, %v381
  %v383 = vsel %vm375, %v359, 0.0
  %v384 = vadd.f32 %v382, %v383
  %v385 = vsel %vm375, %v362, 0.0
  %v386 = vadd.f32 %v384, %v385
  %v387 = vsel %vm375, %v367, 0.0
  %v388 = vadd.f32 %v386, %v387
  %v389 = vsel %vm375, %v370, 0.0
  %v390 = vadd.f32 %v388, %v389
  %v391 = vrot.slane %v390, 4
  %v392 = vadd.f32 %v390, %v391
  %v393 = vrot.slane %v392, 2
  %v394 = vadd.f32 %v392, %v393
  %v395 = vrot.slane %v394, 1
  %v396 = vadd.f32 %v394, %v395
  %v397 = vmul.f32 %v343, %v343
  %v398 = vmul.f32 %v346, %v346
  %v399 = vmul.f32 %v351, %v351
  %v400 = vmul.f32 %v354, %v354
  %v401 = vmul.f32 %v359, %v359
  %v402 = vmul.f32 %v362, %v362
  %v403 = vmul.f32 %v367, %v367
  %v404 = vmul.f32 %v370, %v370
  %v405 = vsel %vm375, %v397, 0.0
  %v406 = vsel %vm375, %v398, 0.0
  %v407 = vadd.f32 %v405, %v406
  %v408 = vsel %vm375, %v399, 0.0
  %v409 = vadd.f32 %v407, %v408
  %v410 = vsel %vm375, %v400, 0.0
  %v411 = vadd.f32 %v409, %v410
  %v412 = vsel %vm375, %v401, 0.0
  %v413 = vadd.f32 %v411, %v412
  %v414 = vsel %vm375, %v402, 0.0
  %v415 = vadd.f32 %v413, %v414
  %v416 = vsel %vm375, %v403, 0.0
  %v417 = vadd.f32 %v415, %v416
  %v418 = vsel %vm375, %v404, 0.0
  %v419 = vadd.f32 %v417, %v418
  %v420 = vrot.slane %v419, 4
  %v421 = vadd.f32 %v419, %v420
  %v422 = vrot.slane %v421, 2
  %v423 = vadd.f32 %v421, %v422
  %v424 = vrot.slane %v423, 1
  %v425 = vadd.f32 %v423, %v424
  %v426 = vmul.f32 %v396, 0.015625
  %v427 = vmul.f32 %v425, 0.015625
  %v428 = vmul.f32 %v426, %v426
  %v429 = vsub.f32 %v427, %v428
  %v430 = vmax.f32 %v429, 0.0
  %v431 = vadd.f32 %v430, 1e-05
  %v432 = vrsqrt.pop %v431
  %v433 = vmul.f32 %v432, %v373
  %v434 = vsub.f32 %v343, %v426
  %v435 = vsub.f32 %v346, %v426
  %v436 = vsub.f32 %v351, %v426
  %v437 = vsub.f32 %v354, %v426
  %v438 = vsub.f32 %v359, %v426
  %v439 = vsub.f32 %v362, %v426
  %v440 = vsub.f32 %v367, %v426
  %v441 = vsub.f32 %v370, %v426
  %v442 = vlaneseq
  %v443 = vshrl.u32 %v442, 7
  %v444 = vsub.s32 0, %v443
  %v445 = vrot.slane %v433, %v444
  %v446 = vmul.f32 %v434, %v445
  %v447 = vmul.f32 %v435, %v445
  %v448 = vmul.f32 %v436, %v445
  %v449 = vmul.f32 %v437, %v445
  %v450 = vmul.f32 %v438, %v445
  %v451 = vmul.f32 %v439, %v445
  %v452 = vmul.f32 %v440, %v445
  %v453 = vmul.f32 %v441, %v445
  %v455 = vlaneseq
  %v456 = vshrl.u32 %v455, 7
  %v457 = vsub.s32 0, %v456
  %v458 = vrot.slane %v374, %v457
  %v460 = vadd.f32 %v446, %v458
  %v461 = vadd.f32 %v447, %v458
  %v462 = vadd.f32 %v448, %v458
  %v463 = vadd.f32 %v449, %v458
  %v464 = vadd.f32 %v450, %v458
  %v465 = vadd.f32 %v451, %v458
  %v466 = vadd.f32 %v452, %v458
  %v467 = vadd.f32 %v453, %v458
  %vm468 = vcmp.gt.f32.partialorder %v460, 0.0
  %vm469 = vcmp.gt.f32.partialorder %v461, 0.0
  %vm470 = vcmp.gt.f32.partialorder %v462, 0.0
  %vm471 = vcmp.gt.f32.partialorder %v463, 0.0
  %vm472 = vcmp.gt.f32.partialorder %v464, 0.0
  %vm473 = vcmp.gt.f32.partialorder %v465, 0.0
  %vm474 = vcmp.gt.f32.partialorder %v466, 0.0
  %vm475 = vcmp.gt.f32.partialorder %v467, 0.0
  %v476 = vmul.f32 %v460, 0.2
  %v477 = vmul.f32 %v461, 0.2
  %v478 = vmul.f32 %v462, 0.2
  %v479 = vmul.f32 %v463, 0.2
  %v480 = vmul.f32 %v464, 0.2
  %v481 = vmul.f32 %v465, 0.2
  %v482 = vmul.f32 %v466, 0.2
  %v483 = vmul.f32 %v467, 0.2
  %v484 = vsel %vm468, %v460, %v476
  %v485 = vsel %vm469, %v461, %v477
  %v486 = vsel %vm470, %v462, %v478
  %v487 = vsel %vm471, %v463, %v479
  %v488 = vsel %vm472, %v464, %v480
  %v489 = vsel %vm473, %v465, %v481
  %v490 = vsel %vm474, %v466, %v482
  %v491 = vsel %vm475, %v467, %v483
  %v492 = vpack.c.bf16 %v485, %v484
  %v493 = vpack.c.bf16 %v487, %v486
  %v494 = vpack.c.bf16 %v489, %v488
  %v495 = vpack.c.bf16 %v491, %v490
  %v496 = vld [vmem:[%s9] sm:$0xf]
  %v497 = vld [vmem:[%s9 + $0x4] sm:$0xf]
  %v498 = vld [vmem:[%s9 + $0x8] sm:$0xf]
  %v499 = vld [vmem:[%s9 + $0xc] sm:$0xf]
  %v500 = vld [vmem:[%s9 + $0x10] sm:$0xf]
  %v501 = vld [vmem:[%s9 + $0x14] sm:$0xf]
  %v502 = vld [vmem:[%s9 + $0x18] sm:$0xf]
  %v503 = vld [vmem:[%s9 + $0x1c] sm:$0xf]
  %v504 = vld [vmem:[%s10] sm:$0x1]
  %v506 = vlaneseq
  %v507 = vshrl.u32 %v506, 7
  %v508 = vsub.s32 0, %v507
  %v509 = vrot.slane %v504, %v508
  %v519 = vunpack.c.l.b16 %v496
  %v520 = vunpack.c.l.b16 %v497
  %v521 = vunpack.c.l.b16 %v498
  %v522 = vunpack.c.l.b16 %v499
  %v523 = vunpack.c.l.b16 %v500
  %v524 = vunpack.c.l.b16 %v501
  %v525 = vunpack.c.l.b16 %v502
  %v526 = vunpack.c.l.b16 %v503
  %v527 = vpack.c.b16 %v520, %v519
  %v528 = vpack.c.b16 %v522, %v521
  %v529 = vpack.c.b16 %v524, %v523
  %v530 = vpack.c.b16 %v526, %v525
  %v536 = vsel %vm375, %v492, 0
  %v539 = vsel %vm375, %v493, 0
  %v542 = vsel %vm375, %v494, 0
  %v545 = vsel %vm375, %v495, 0
  %547 = vmatprep.subr.bf16.mxu0 0
  %548 = vmatpush1.bf16.msra.mxu0 %v527
  %549 = vmatprep.subr.bf16.mxu0 0
  %550 = vmatpush1.bf16.msra.mxu0 %v528
  %551 = vmatprep.subr.bf16.mxu0 0
  %552 = vmatpush1.bf16.msra.mxu0 %v529
  %553 = vmatprep.subr.bf16.mxu0 0
  %554 = vmatpush1.bf16.msra.mxu0 %v530
  %555 = vmatprep.subr.bf16.mxu0 0
  %556 = vmatpush1.bf16.msra.mxu0 0
  %557 = vmatprep.subr.bf16.mxu0 0
  %558 = vmatpush1.bf16.msra.mxu0 0
  %559 = vmatprep.subr.bf16.mxu0 0
  %560 = vmatpush1.bf16.msra.mxu0 0
  %561 = vmatprep.subr.bf16.mxu0 0
  %562 = vmatpush1.bf16.msra.mxu0 0
  %563 = vmatprep.subr.bf16.mxu0 0
  %564 = vmatpush1.bf16.msra.mxu0 0
  %565 = vmatprep.subr.bf16.mxu0 0
  %566 = vmatpush1.bf16.msra.mxu0 0
  %567 = vmatprep.subr.bf16.mxu0 0
  %568 = vmatpush1.bf16.msra.mxu0 0
  %569 = vmatprep.subr.bf16.mxu0 0
  %570 = vmatpush1.bf16.msra.mxu0 0
  %571 = vmatprep.subr.bf16.mxu0 0
  %572 = vmatpush1.bf16.msra.mxu0 0
  %573 = vmatprep.subr.bf16.mxu0 0
  %574 = vmatpush1.bf16.msra.mxu0 0
  %575 = vmatprep.subr.bf16.mxu0 0
  %576 = vmatpush1.bf16.msra.mxu0 0
  %577 = vmatprep.subr.bf16.mxu0 0
  %578 = vmatpush1.bf16.msra.mxu0 0
  %579 = vmatprep.mubr.bf16.mxu0 0
  %580 = vmatmul.mubr.bf16.gmra.mrb[0].mxu0 %v536
  %v581 = vpop.f32.mrb[0].mxu0
  %v582 = vadd.f32 %v509, %v581
  %v583 = vpop.f32.mrb[0].mxu0
  %v584 = vpop.f32.mrb[0].mxu0
  %v585 = vadd.f32 %v509, %v584
  %v586 = vpop.f32.mrb[0].mxu0
  %587 = vmatprep.mubr.bf16.mxu0 0
  %588 = vmatmul.mubr.bf16.gmra.mrb[0].mxu0 %v539
  %v589 = vpop.f32.mrb[0].mxu0
  %v590 = vadd.f32 %v509, %v589
  %v591 = vpop.f32.mrb[0].mxu0
  %v592 = vpop.f32.mrb[0].mxu0
  %v593 = vadd.f32 %v509, %v592
  %v594 = vpop.f32.mrb[0].mxu0
  %595 = vmatprep.mubr.bf16.mxu0 0
  %596 = vmatmul.mubr.bf16.gmra.mrb[0].mxu0 %v542
  %v597 = vpop.f32.mrb[0].mxu0
  %v598 = vadd.f32 %v509, %v597
  %v599 = vpop.f32.mrb[0].mxu0
  %v600 = vpop.f32.mrb[0].mxu0
  %v601 = vadd.f32 %v509, %v600
  %v602 = vpop.f32.mrb[0].mxu0
  %603 = vmatprep.mubr.bf16.mxu0 0
  %604 = vmatmul.mubr.bf16.gmra.mrb[0].mxu0 %v545
  %v605 = vpop.f32.mrb[0].mxu0
  %v606 = vadd.f32 %v509, %v605
  %v607 = vpop.f32.mrb[0].mxu0
  %v608 = vpop.f32.mrb[0].mxu0
  %v609 = vadd.f32 %v509, %v608
  %v610 = vpop.f32.mrb[0].mxu0
  %611 = vdwg.mxu0
  %v612 = vld [vmem:[%s11] sm:$0x1]
  %v613 = vld [vmem:[%s12] sm:$0x1]
  %v614 = vadd.f32 %v582, %v585
  %v615 = vadd.f32 %v614, %v590
  %v616 = vadd.f32 %v615, %v593
  %v617 = vadd.f32 %v616, %v598
  %v618 = vadd.f32 %v617, %v601
  %v619 = vadd.f32 %v618, %v606
  %v620 = vadd.f32 %v619, %v609
  %v621 = vrot.slane %v620, 4
  %v622 = vadd.f32 %v620, %v621
  %v623 = vrot.slane %v622, 2
  %v624 = vadd.f32 %v622, %v623
  %v625 = vrot.slane %v624, 1
  %v626 = vadd.f32 %v624, %v625
  %v627 = vmul.f32 %v582, %v582
  %v628 = vmul.f32 %v585, %v585
  %v629 = vmul.f32 %v590, %v590
  %v630 = vmul.f32 %v593, %v593
  %v631 = vmul.f32 %v598, %v598
  %v632 = vmul.f32 %v601, %v601
  %v633 = vmul.f32 %v606, %v606
  %v634 = vmul.f32 %v609, %v609
  %v635 = vadd.f32 %v627, %v628
  %v636 = vadd.f32 %v635, %v629
  %v637 = vadd.f32 %v636, %v630
  %v638 = vadd.f32 %v637, %v631
  %v639 = vadd.f32 %v638, %v632
  %v640 = vadd.f32 %v639, %v633
  %v641 = vadd.f32 %v640, %v634
  %v642 = vrot.slane %v641, 4
  %v643 = vadd.f32 %v641, %v642
  %v644 = vrot.slane %v643, 2
  %v645 = vadd.f32 %v643, %v644
  %v646 = vrot.slane %v645, 1
  %v647 = vadd.f32 %v645, %v646
  %v648 = vmul.f32 %v626, 0.015625
  %v649 = vmul.f32 %v647, 0.015625
  %v650 = vmul.f32 %v648, %v648
  %v651 = vsub.f32 %v649, %v650
  %v652 = vmax.f32 %v651, 0.0
  %v653 = vadd.f32 %v652, 1e-05
  %v654 = vrsqrt.pop %v653
  %v655 = vmul.f32 %v654, %v612
  %v656 = vsub.f32 %v582, %v648
  %v657 = vsub.f32 %v585, %v648
  %v658 = vsub.f32 %v590, %v648
  %v659 = vsub.f32 %v593, %v648
  %v660 = vsub.f32 %v598, %v648
  %v661 = vsub.f32 %v601, %v648
  %v662 = vsub.f32 %v606, %v648
  %v663 = vsub.f32 %v609, %v648
  %v664 = vlaneseq
  %v665 = vshrl.u32 %v664, 7
  %v666 = vsub.s32 0, %v665
  %v667 = vrot.slane %v655, %v666
  %v668 = vmul.f32 %v656, %v667
  %v669 = vmul.f32 %v657, %v667
  %v670 = vmul.f32 %v658, %v667
  %v671 = vmul.f32 %v659, %v667
  %v672 = vmul.f32 %v660, %v667
  %v673 = vmul.f32 %v661, %v667
  %v674 = vmul.f32 %v662, %v667
  %v675 = vmul.f32 %v663, %v667
  %v677 = vlaneseq
  %v678 = vshrl.u32 %v677, 7
  %v679 = vsub.s32 0, %v678
  %v680 = vrot.slane %v613, %v679
  %v682 = vadd.f32 %v668, %v680
  %v683 = vadd.f32 %v669, %v680
  %v684 = vadd.f32 %v670, %v680
  %v685 = vadd.f32 %v671, %v680
  %v686 = vadd.f32 %v672, %v680
  %v687 = vadd.f32 %v673, %v680
  %v688 = vadd.f32 %v674, %v680
  %v689 = vadd.f32 %v675, %v680
  %vm690 = vcmp.gt.f32.partialorder %v682, 0.0
  %vm691 = vcmp.gt.f32.partialorder %v683, 0.0
  %vm692 = vcmp.gt.f32.partialorder %v684, 0.0
  %vm693 = vcmp.gt.f32.partialorder %v685, 0.0
  %vm694 = vcmp.gt.f32.partialorder %v686, 0.0
  %vm695 = vcmp.gt.f32.partialorder %v687, 0.0
  %vm696 = vcmp.gt.f32.partialorder %v688, 0.0
  %vm697 = vcmp.gt.f32.partialorder %v689, 0.0
  %v698 = vmul.f32 %v682, 0.3
  %v699 = vmul.f32 %v683, 0.3
  %v700 = vmul.f32 %v684, 0.3
  %v701 = vmul.f32 %v685, 0.3
  %v702 = vmul.f32 %v686, 0.3
  %v703 = vmul.f32 %v687, 0.3
  %v704 = vmul.f32 %v688, 0.3
  %v705 = vmul.f32 %v689, 0.3
  %v706 = vsel %vm690, %v682, %v698
  %v707 = vsel %vm691, %v683, %v699
  %v708 = vsel %vm692, %v684, %v700
  %v709 = vsel %vm693, %v685, %v701
  %v710 = vsel %vm694, %v686, %v702
  %v711 = vsel %vm695, %v687, %v703
  %v712 = vsel %vm696, %v688, %v704
  %v713 = vsel %vm697, %v689, %v705
  %v714 = vpack.c.bf16 %v707, %v706
  %v715 = vpack.c.bf16 %v709, %v708
  %v716 = vpack.c.bf16 %v711, %v710
  %v717 = vpack.c.bf16 %v713, %v712
  %v722 = vunpack.c.l.b16 %v714
  %v723 = vunpack.c.h.b16 %v714
  %v724 = vunpack.c.l.b16 %v715
  %v725 = vunpack.c.h.b16 %v715
  %v726 = vunpack.c.l.b16 %v716
  %v727 = vunpack.c.h.b16 %v716
  %v728 = vunpack.c.l.b16 %v717
  %v729 = vunpack.c.h.b16 %v717
  %v730 = vpack.c.b16 %v722, %v722
  %v731 = vpack.c.b16 %v723, %v723
  %v732 = vpack.c.b16 %v724, %v724
  %v733 = vpack.c.b16 %v725, %v725
  %v734 = vpack.c.b16 %v726, %v726
  %v735 = vpack.c.b16 %v727, %v727
  %v736 = vpack.c.b16 %v728, %v728
  %v737 = vpack.c.b16 %v729, %v729
  %746 = vst [vmem:[%s13] sm:$0xf] %v730
  %747 = vst [vmem:[%s13 + $0x4] sm:$0xf] %v731
  %748 = vst [vmem:[%s13 + $0x8] sm:$0xf] %v732
  %749 = vst [vmem:[%s13 + $0xc] sm:$0xf] %v733
  %750 = vst [vmem:[%s13 + $0x10] sm:$0xf] %v734
  %751 = vst [vmem:[%s13 + $0x14] sm:$0xf] %v735
  %752 = vst [vmem:[%s13 + $0x18] sm:$0xf] %v736
  %753 = vst [vmem:[%s13 + $0x1c] sm:$0xf] %v737
  // Predicated region
  $region54: #{forward.2} parent=0 // pred_check
    _
  $region55: #{forward.2} parent=0 // pred_check_branch
    %755 = sbr.rel (0) target = $region57
  $region56: #{forward.2} parent=0 // pred_region
    _
  $region57: #{forward.2} parent=0 // pred_fallthru
    _
  // Predicated region
  $region58: #{forward.2} parent=0 // pred_check
    _
  $region59: #{forward.2} parent=0 // pred_check_branch
    %757 = sbr.rel (0) target = $region61
  $region60: #{forward.2} parent=0 // pred_region
    _
  $region61: #{forward.2} parent=0 // pred_fallthru
    _

// kernel: forward.3
$region0: #{forward.3}
  #allocation0 [shape = 'u32[]', space=smem, size = 0x4, offset = 0x4, fixed_abs, tag = 'smem constant byte address 0x4 - core index']
  #allocation1 [shape = 'u32[144,128]{1,0:T(1,128)}', space=vmem, size = 0x12000, scoped, tag = 'internal scratch']
  %s0 = inlined_call_operand.vmem [shape: bf16[64,128], index: 0, kind: input, shape index: {}]
  %s1 = inlined_call_operand.vmem [shape: bf16[128,784], index: 1, kind: input, shape index: {}]
  %s2 = inlined_call_operand.vmem [shape: f32[1,784], index: 2, kind: input, shape index: {}]
  %s3 = inlined_call_operand.hbm [shape: f32[64,784], index: 3, kind: output, shape index: {}]
  %s4 = sld [smem:[#allocation0]]
  $region22: #{forward.3} parent=0
    _
  %s6 = ssub.s32 1, %s4
  %s7 = scalar_select 0, %s6, %s4
  $region1: #{forward.3} parent=0
    #allocation2 [shape = 'u8[229376]{0}', space=vmem, size = 0x38000, scoped, tag = 'output window, operand 0, single buffered']
    #allocation3 [shape = 's32[1]{0}', space=sflag, size = 0x4, scoped, tag = 'scoped memory for forward.3']
    %8 = vsyncpa [#allocation3], 0
    // Predicated region
    $region2: #{forward.3} parent=1 // pred_check
      _
    $region3: #{forward.3} parent=1 // pred_check_branch
      %10 = sbr.rel (0) target = $region5
    $region4: #{forward.3} parent=1 // pred_region
      _
    $region5: #{forward.3} parent=1 // pred_fallthru
      _
    // Predicated region
    $region6: #{forward.3} parent=1 // pred_check
      _
    $region7: #{forward.3} parent=1 // pred_check_branch
      %12 = sbr.rel (0) target = $region9
    $region8: #{forward.3} parent=1 // pred_region
      _
    $region9: #{forward.3} parent=1 // pred_fallthru
      _
    // Predicated region
    $region10: #{forward.3} parent=1 // pred_check
      _
    $region11: #{forward.3} parent=1 // pred_check_branch
      %14 = sbr.rel (0) target = $region13
    $region12: #{forward.3} parent=1 // pred_region
      _
    $region13: #{forward.3} parent=1 // pred_fallthru
      _
    %v16 = vld [vmem:[%s0] sm:$0xf]
    %v17 = vld [vmem:[%s0 + $0x4] sm:$0xf]
    %v18 = vld [vmem:[%s0 + $0x8] sm:$0xf]
    %v19 = vld [vmem:[%s0 + $0xc] sm:$0xf]
    %v20 = vld [vmem:[%s0 + $0x10] sm:$0xf]
    %v21 = vld [vmem:[%s0 + $0x14] sm:$0xf]
    %v22 = vld [vmem:[%s0 + $0x18] sm:$0xf]
    %v23 = vld [vmem:[%s0 + $0x1c] sm:$0xf]
    %v24 = vld [vmem:[%s1] sm:$0xff]
    %v25 = vld [vmem:[%s1 + $0x8] sm:$0xff]
    %v26 = vld [vmem:[%s1 + $0x10] sm:$0xff]
    %v27 = vld [vmem:[%s1 + $0x18] sm:$0xf]
    %v28 = vld [vmem:[%s1 + $0x1c] sm:$0xff]
    %v29 = vld [vmem:[%s1 + $0x24] sm:$0xff]
    %v30 = vld [vmem:[%s1 + $0x2c] sm:$0xff]
    %v31 = vld [vmem:[%s1 + $0x34] sm:$0xf]
    %v32 = vld [vmem:[%s1 + $0x38] sm:$0xff]
    %v33 = vld [vmem:[%s1 + $0x40] sm:$0xff]
    %v34 = vld [vmem:[%s1 + $0x48] sm:$0xff]
    %v35 = vld [vmem:[%s1 + $0x50] sm:$0xf]
    %v36 = vld [vmem:[%s1 + $0x54] sm:$0xff]
    %v37 = vld [vmem:[%s1 + $0x5c] sm:$0xff]
    %v38 = vld [vmem:[%s1 + $0x64] sm:$0xff]
    %v39 = vld [vmem:[%s1 + $0x6c] sm:$0xf]
    %v40 = vld [vmem:[%s1 + $0x70] sm:$0xff]
    %v41 = vld [vmem:[%s1 + $0x78] sm:$0xff]
    %v42 = vld [vmem:[%s1 + $0x80] sm:$0xff]
    %v43 = vld [vmem:[%s1 + $0x88] sm:$0xf]
    %v44 = vld [vmem:[%s1 + $0x8c] sm:$0xff]
    %v45 = vld [vmem:[%s1 + $0x94] sm:$0xff]
    %v46 = vld [vmem:[%s1 + $0x9c] sm:$0xff]
    %v47 = vld [vmem:[%s1 + $0xa4] sm:$0xf]
    %v48 = vld [vmem:[%s1 + $0xa8] sm:$0xff]
    %v49 = vld [vmem:[%s1 + $0xb0] sm:$0xff]
    %v50 = vld [vmem:[%s1 + $0xb8] sm:$0xff]
    %v51 = vld [vmem:[%s1 + $0xc0] sm:$0xf]
    %v52 = vld [vmem:[%s1 + $0xc4] sm:$0xff]
    %v53 = vld [vmem:[%s1 + $0xcc] sm:$0xff]
    %v54 = vld [vmem:[%s1 + $0xd4] sm:$0xff]
    %v55 = vld [vmem:[%s1 + $0xdc] sm:$0xf]
    %v56 = vld [vmem:[%s1 + $0xe0] sm:$0xff]
    %v57 = vld [vmem:[%s1 + $0xe8] sm:$0xff]
    %v58 = vld [vmem:[%s1 + $0xf0] sm:$0xff]
    %v59 = vld [vmem:[%s1 + $0xf8] sm:$0xf]
    %v60 = vld [vmem:[%s1 + $0xfc] sm:$0xff]
    %v61 = vld [vmem:[%s1 + $0x104] sm:$0xff]
    %v62 = vld [vmem:[%s1 + $0x10c] sm:$0xff]
    %v63 = vld [vmem:[%s1 + $0x114] sm:$0xf]
    %v64 = vld [vmem:[%s1 + $0x118] sm:$0xff]
    %v65 = vld [vmem:[%s1 + $0x120] sm:$0xff]
    %v66 = vld [vmem:[%s1 + $0x128] sm:$0xff]
    %v67 = vld [vmem:[%s1 + $0x130] sm:$0xf]
    %v68 = vld [vmem:[%s1 + $0x134] sm:$0xff]
    %v69 = vld [vmem:[%s1 + $0x13c] sm:$0xff]
    %v70 = vld [vmem:[%s1 + $0x144] sm:$0xff]
    %v71 = vld [vmem:[%s1 + $0x14c] sm:$0xf]
    %v72 = vld [vmem:[%s1 + $0x150] sm:$0xff]
    %v73 = vld [vmem:[%s1 + $0x158] sm:$0xff]
    %v74 = vld [vmem:[%s1 + $0x160] sm:$0xff]
    %v75 = vld [vmem:[%s1 + $0x168] sm:$0xf]
    %v76 = vld [vmem:[%s1 + $0x16c] sm:$0xff]
    %v77 = vld [vmem:[%s1 + $0x174] sm:$0xff]
    %v78 = vld [vmem:[%s1 + $0x17c] sm:$0xff]
    %v79 = vld [vmem:[%s1 + $0x184] sm:$0xf]
    %v80 = vld [vmem:[%s1 + $0x188] sm:$0xff]
    %v81 = vld [vmem:[%s1 + $0x190] sm:$0xff]
    %v82 = vld [vmem:[%s1 + $0x198] sm:$0xff]
    %v83 = vld [vmem:[%s1 + $0x1a0] sm:$0xf]
    %v84 = vld [vmem:[%s1 + $0x1a4] sm:$0xff]
    %v85 = vld [vmem:[%s1 + $0x1ac] sm:$0xff]
    %v86 = vld [vmem:[%s1 + $0x1b4] sm:$0xff]
    %v87 = vld [vmem:[%s1 + $0x1bc] sm:$0xf]
    %v88 = vld [vmem:[%s2] sm:$0x7f]
    %v90 = vlaneseq
    %v91 = vshrl.u32 %v90, 7
    %v92 = vsub.s32 0, %v91
    %v93 = vrot.slane %v88, %v92
    %v94 = vlaneseq
    %v95 = vshrl.u32 %v94, 7
    %v96 = vsub.s32 1, %v95
    %v97 = vrot.slane %v88, %v96
    %v98 = vlaneseq
    %v99 = vshrl.u32 %v98, 7
    %v100 = vsub.s32 2, %v99
    %v101 = vrot.slane %v88, %v100
    %v102 = vlaneseq
    %v103 = vshrl.u32 %v102, 7
    %v104 = vsub.s32 3, %v103
    %v105 = vrot.slane %v88, %v104
    %v106 = vlaneseq
    %v107 = vshrl.u32 %v106, 7
    %v108 = vsub.s32 4, %v107
    %v109 = vrot.slane %v88, %v108
    %v110 = vlaneseq
    %v111 = vshrl.u32 %v110, 7
    %v112 = vsub.s32 5, %v111
    %v113 = vrot.slane %v88, %v112
    %v114 = vlaneseq
    %v115 = vshrl.u32 %v114, 7
    %v116 = vsub.s32 6, %v115
    %v117 = vrot.slane %v88, %v116
    %v133 = vunpack.c.l.b16 %v16
    %v134 = vunpack.c.l.b16 %v17
    %v135 = vunpack.c.l.b16 %v18
    %v136 = vunpack.c.l.b16 %v19
    %v137 = vunpack.c.l.b16 %v20
    %v138 = vunpack.c.l.b16 %v21
    %v139 = vunpack.c.l.b16 %v22
    %v140 = vunpack.c.l.b16 %v23
    %v141 = vpack.c.b16 %v134, %v133
    %v142 = vpack.c.b16 %v136, %v135
    %v143 = vpack.c.b16 %v138, %v137
    %v144 = vpack.c.b16 %v140, %v139
    %v213 = vunpack.c.l.b16 %v24
    %v214 = vunpack.c.h.b16 %v24
    %v215 = vunpack.c.l.b16 %v25
    %v216 = vunpack.c.h.b16 %v25
    %v217 = vunpack.c.l.b16 %v26
    %v218 = vunpack.c.h.b16 %v26
    %v219 = vunpack.c.l.b16 %v27
    %v220 = vunpack.c.l.b16 %v28
    %v221 = vunpack.c.h.b16 %v28
    %v222 = vunpack.c.l.b16 %v29
    %v223 = vunpack.c.h.b16 %v29
    %v224 = vunpack.c.l.b16 %v30
    %v225 = vunpack.c.h.b16 %v30
    %v226 = vunpack.c.l.b16 %v31
    %v227 = vunpack.c.l.b16 %v32
    %v228 = vunpack.c.h.b16 %v32
    %v229 = vunpack.c.l.b16 %v33
    %v230 = vunpack.c.h.b16 %v33
    %v231 = vunpack.c.l.b16 %v34
    %v232 = vunpack.c.h.b16 %v34
    %v233 = vunpack.c.l.b16 %v35
    %v234 = vunpack.c.l.b16 %v36
    %v235 = vunpack.c.h.b16 %v36
    %v236 = vunpack.c.l.b16 %v37
    %v237 = vunpack.c.h.b16 %v37
    %v238 = vunpack.c.l.b16 %v38
    %v239 = vunpack.c.h.b16 %v38
    %v240 = vunpack.c.l.b16 %v39
    %v241 = vunpack.c.l.b16 %v40
    %v242 = vunpack.c.h.b16 %v40
    %v243 = vunpack.c.l.b16 %v41
    %v244 = vunpack.c.h.b16 %v41
    %v245 = vunpack.c.l.b16 %v42
    %v246 = vunpack.c.h.b16 %v42
    %v247 = vunpack.c.l.b16 %v43
    %v248 = vunpack.c.l.b16 %v44
    %v249 = vunpack.c.h.b16 %v44
    %v250 = vunpack.c.l.b16 %v45
    %v251 = vunpack.c.h.b16 %v45
    %v252 = vunpack.c.l.b16 %v46
    %v253 = vunpack.c.h.b16 %v46
    %v254 = vunpack.c.l.b16 %v47
    %v255 = vunpack.c.l.b16 %v48
    %v256 = vunpack.c.h.b16 %v48
    %v257 = vunpack.c.l.b16 %v49
    %v258 = vunpack.c.h.b16 %v49
    %v259 = vunpack.c.l.b16 %v50
    %v260 = vunpack.c.h.b16 %v50
    %v261 = vunpack.c.l.b16 %v51
    %v262 = vunpack.c.l.b16 %v52
    %v263 = vunpack.c.h.b16 %v52
    %v264 = vunpack.c.l.b16 %v53
    %v265 = vunpack.c.h.b16 %v53
    %v266 = vunpack.c.l.b16 %v54
    %v267 = vunpack.c.h.b16 %v54
    %v268 = vunpack.c.l.b16 %v55
    %v269 = vunpack.c.l.b16 %v56
    %v270 = vunpack.c.h.b16 %v56
    %v271 = vunpack.c.l.b16 %v57
    %v272 = vunpack.c.h.b16 %v57
    %v273 = vunpack.c.l.b16 %v58
    %v274 = vunpack.c.h.b16 %v58
    %v275 = vunpack.c.l.b16 %v59
    %v276 = vunpack.c.l.b16 %v60
    %v277 = vunpack.c.h.b16 %v60
    %v278 = vunpack.c.l.b16 %v61
    %v279 = vunpack.c.h.b16 %v61
    %v280 = vunpack.c.l.b16 %v62
    %v281 = vunpack.c.h.b16 %v62
    %v282 = vunpack.c.l.b16 %v63
    %v283 = vunpack.c.l.b16 %v64
    %v284 = vunpack.c.h.b16 %v64
    %v285 = vunpack.c.l.b16 %v65
    %v286 = vunpack.c.h.b16 %v65
    %v287 = vunpack.c.l.b16 %v66
    %v288 = vunpack.c.h.b16 %v66
    %v289 = vunpack.c.l.b16 %v67
    %v290 = vunpack.c.l.b16 %v68
    %v291 = vunpack.c.h.b16 %v68
    %v292 = vunpack.c.l.b16 %v69
    %v293 = vunpack.c.h.b16 %v69
    %v294 = vunpack.c.l.b16 %v70
    %v295 = vunpack.c.h.b16 %v70
    %v296 = vunpack.c.l.b16 %v71
    %v297 = vunpack.c.l.b16 %v72
    %v298 = vunpack.c.h.b16 %v72
    %v299 = vunpack.c.l.b16 %v73
    %v300 = vunpack.c.h.b16 %v73
    %v301 = vunpack.c.l.b16 %v74
    %v302 = vunpack.c.h.b16 %v74
    %v303 = vunpack.c.l.b16 %v75
    %v304 = vunpack.c.l.b16 %v76
    %v305 = vunpack.c.h.b16 %v76
    %v306 = vunpack.c.l.b16 %v77
    %v307 = vunpack.c.h.b16 %v77
    %v308 = vunpack.c.l.b16 %v78
    %v309 = vunpack.c.h.b16 %v78
    %v310 = vunpack.c.l.b16 %v79
    %v311 = vunpack.c.l.b16 %v80
    %v312 = vunpack.c.h.b16 %v80
    %v313 = vunpack.c.l.b16 %v81
    %v314 = vunpack.c.h.b16 %v81
    %v315 = vunpack.c.l.b16 %v82
    %v316 = vunpack.c.h.b16 %v82
    %v317 = vunpack.c.l.b16 %v83
    %v318 = vunpack.c.l.b16 %v84
    %v319 = vunpack.c.h.b16 %v84
    %v320 = vunpack.c.l.b16 %v85
    %v321 = vunpack.c.h.b16 %v85
    %v322 = vunpack.c.l.b16 %v86
    %v323 = vunpack.c.h.b16 %v86
    %v324 = vunpack.c.l.b16 %v87
    %v325 = vpack.c.b16 %v220, %v213
    %v326 = vpack.c.b16 %v221, %v214
    %v327 = vpack.c.b16 %v222, %v215
    %v328 = vpack.c.b16 %v223, %v216
    %v329 = vpack.c.b16 %v224, %v217
    %v330 = vpack.c.b16 %v225, %v218
    %v331 = vpack.c.b16 %v226, %v219
    %v332 = vpack.c.b16 %v234, %v227
    %v333 = vpack.c.b16 %v235, %v228
    %v334 = vpack.c.b16 %v236, %v229
    %v335 = vpack.c.b16 %v237, %v230
    %v336 = vpack.c.b16 %v238, %v231
    %v337 = vpack.c.b16 %v239, %v232
    %v338 = vpack.c.b16 %v240, %v233
    %v339 = vpack.c.b16 %v248, %v241
    %v340 = vpack.c.b16 %v249, %v242
    %v341 = vpack.c.b16 %v250, %v243
    %v342 = vpack.c.b16 %v251, %v244
    %v343 = vpack.c.b16 %v252, %v245
    %v344 = vpack.c.b16 %v253, %v246
    %v345 = vpack.c.b16 %v254, %v247
    %v346 = vpack.c.b16 %v262, %v255
    %v347 = vpack.c.b16 %v263, %v256
    %v348 = vpack.c.b16 %v264, %v257
    %v349 = vpack.c.b16 %v265, %v258
    %v350 = vpack.c.b16 %v266, %v259
    %v351 = vpack.c.b16 %v267, %v260
    %v352 = vpack.c.b16 %v268, %v261
    %v353 = vpack.c.b16 %v276, %v269
    %v354 = vpack.c.b16 %v277, %v270
    %v355 = vpack.c.b16 %v278, %v271
    %v356 = vpack.c.b16 %v279, %v272
    %v357 = vpack.c.b16 %v280, %v273
    %v358 = vpack.c.b16 %v281, %v274
    %v359 = vpack.c.b16 %v282, %v275
    %v360 = vpack.c.b16 %v290, %v283
    %v361 = vpack.c.b16 %v291, %v284
    %v362 = vpack.c.b16 %v292, %v285
    %v363 = vpack.c.b16 %v293, %v286
    %v364 = vpack.c.b16 %v294, %v287
    %v365 = vpack.c.b16 %v295, %v288
    %v366 = vpack.c.b16 %v296, %v289
    %v367 = vpack.c.b16 %v304, %v297
    %v368 = vpack.c.b16 %v305, %v298
    %v369 = vpack.c.b16 %v306, %v299
    %v370 = vpack.c.b16 %v307, %v300
    %v371 = vpack.c.b16 %v308, %v301
    %v372 = vpack.c.b16 %v309, %v302
    %v373 = vpack.c.b16 %v310, %v303
    %v374 = vpack.c.b16 %v318, %v311
    %v375 = vpack.c.b16 %v319, %v312
    %v376 = vpack.c.b16 %v320, %v313
    %v377 = vpack.c.b16 %v321, %v314
    %v378 = vpack.c.b16 %v322, %v315
    %v379 = vpack.c.b16 %v323, %v316
    %v380 = vpack.c.b16 %v324, %v317
    %437 = vmatprep.subr.bf16.mxu0 %v326
    %438 = vmatpush1.bf16.msra.mxu0 %v325
    %439 = vmatprep.subr.bf16.mxu0 %v333
    %440 = vmatpush1.bf16.msra.mxu0 %v332
    %441 = vmatprep.subr.bf16.mxu0 %v340
    %442 = vmatpush1.bf16.msra.mxu0 %v339
    %443 = vmatprep.subr.bf16.mxu0 %v347
    %444 = vmatpush1.bf16.msra.mxu0 %v346
    %445 = vmatprep.subr.bf16.mxu0 %v354
    %446 = vmatpush1.bf16.msra.mxu0 %v353
    %447 = vmatprep.subr.bf16.mxu0 %v361
    %448 = vmatpush1.bf16.msra.mxu0 %v360
    %449 = vmatprep.subr.bf16.mxu0 %v368
    %450 = vmatpush1.bf16.msra.mxu0 %v367
    %451 = vmatprep.subr.bf16.mxu0 %v375
    %452 = vmatpush1.bf16.msra.mxu0 %v374
    %453 = vmatprep.subr.bf16.mxu0 0
    %454 = vmatpush1.bf16.msra.mxu0 0
    %455 = vmatprep.subr.bf16.mxu0 0
    %456 = vmatpush1.bf16.msra.mxu0 0
    %457 = vmatprep.subr.bf16.mxu0 0
    %458 = vmatpush1.bf16.msra.mxu0 0
    %459 = vmatprep.subr.bf16.mxu0 0
    %460 = vmatpush1.bf16.msra.mxu0 0
    %461 = vmatprep.subr.bf16.mxu0 0
    %462 = vmatpush1.bf16.msra.mxu0 0
    %463 = vmatprep.subr.bf16.mxu0 0
    %464 = vmatpush1.bf16.msra.mxu0 0
    %465 = vmatprep.subr.bf16.mxu0 0
    %466 = vmatpush1.bf16.msra.mxu0 0
    %467 = vmatprep.subr.bf16.mxu0 0
    %468 = vmatpush1.bf16.msra.mxu0 0
    %469 = vmatprep.mubr.bf16.mxu0 0
    %470 = vmatmul.mubr.bf16.gmra.mrb[0].mxu0 %v141
    %v471 = vpop.f32.mrb[0].mxu0
    %v472 = vadd.f32 %v93, %v471
    %v473 = vpop.f32.mrb[0].mxu0
    %v474 = vadd.f32 %v97, %v473
    %v475 = vpop.f32.mrb[0].mxu0
    %v476 = vadd.f32 %v93, %v475
    %v477 = vpop.f32.mrb[0].mxu0
    %v478 = vadd.f32 %v97, %v477
    %479 = vmatprep.mubr.bf16.mxu0 0
    %480 = vmatmul.mubr.bf16.gmra.mrb[0].mxu0 %v142
    %v481 = vpop.f32.mrb[0].mxu0
    %v482 = vadd.f32 %v93, %v481
    %v483 = vpop.f32.mrb[0].mxu0
    %v484 = vadd.f32 %v97, %v483
    %v485 = vpop.f32.mrb[0].mxu0
    %v486 = vadd.f32 %v93, %v485
    %v487 = vpop.f32.mrb[0].mxu0
    %v488 = vadd.f32 %v97, %v487
    %489 = vmatprep.mubr.bf16.mxu0 0
    %490 = vmatmul.mubr.bf16.gmra.mrb[0].mxu0 %v143
    %v491 = vpop.f32.mrb[0].mxu0
    %v492 = vadd.f32 %v93, %v491
    %v493 = vpop.f32.mrb[0].mxu0
    %v494 = vadd.f32 %v97, %v493
    %v495 = vpop.f32.mrb[0].mxu0
    %v496 = vadd.f32 %v93, %v495
    %v497 = vpop.f32.mrb[0].mxu0
    %v498 = vadd.f32 %v97, %v497
    %499 = vmatprep.mubr.bf16.mxu0 0
    %500 = vmatmul.mubr.bf16.gmra.mrb[0].mxu0 %v144
    %v501 = vpop.f32.mrb[0].mxu0
    %v502 = vadd.f32 %v93, %v501
    %v503 = vpop.f32.mrb[0].mxu0
    %v504 = vadd.f32 %v97, %v503
    %v505 = vpop.f32.mrb[0].mxu0
    %v506 = vadd.f32 %v93, %v505
    %v507 = vpop.f32.mrb[0].mxu0
    %v508 = vadd.f32 %v97, %v507
    %509 = vdwg.mxu0
    %510 = vmatprep.subr.bf16.mxu0 %v328
    %511 = vmatpush1.bf16.msra.mxu0 %v327
    %512 = vmatprep.subr.bf16.mxu0 %v335
    %513 = vmatpush1.bf16.msra.mxu0 %v334
    %514 = vmatprep.subr.bf16.mxu0 %v342
    %515 = vmatpush1.bf16.msra.mxu0 %v341
    %516 = vmatprep.subr.bf16.mxu0 %v349
    %517 = vmatpush1.bf16.msra.mxu0 %v348
    %518 = vmatprep.subr.bf16.mxu0 %v356
    %519 = vmatpush1.bf16.msra.mxu0 %v355
    %520 = vmatprep.subr.bf16.mxu0 %v363
    %521 = vmatpush1.bf16.msra.mxu0 %v362
    %522 = vmatprep.subr.bf16.mxu0 %v370
    %523 = vmatpush1.bf16.msra.mxu0 %v369
    %524 = vmatprep.subr.bf16.mxu0 %v377
    %525 = vmatpush1.bf16.msra.mxu0 %v376
    %526 = vmatprep.subr.bf16.mxu0 0
    %527 = vmatpush1.bf16.msra.mxu0 0
    %528 = vmatprep.subr.bf16.mxu0 0
    %529 = vmatpush1.bf16.msra.mxu0 0
    %530 = vmatprep.subr.bf16.mxu0 0
    %531 = vmatpush1.bf16.msra.mxu0 0
    %532 = vmatprep.subr.bf16.mxu0 0
    %533 = vmatpush1.bf16.msra.mxu0 0
    %534 = vmatprep.subr.bf16.mxu0 0
    %535 = vmatpush1.bf16.msra.mxu0 0
    %536 = vmatprep.subr.bf16.mxu0 0
    %537 = vmatpush1.bf16.msra.mxu0 0
    %538 = vmatprep.subr.bf16.mxu0 0
    %539 = vmatpush1.bf16.msra.mxu0 0
    %540 = vmatprep.subr.bf16.mxu0 0
    %541 = vmatpush1.bf16.msra.mxu0 0
    %542 = vmatprep.mubr.bf16.mxu0 0
    %543 = vmatmul.mubr.bf16.gmra.mrb[0].mxu0 %v141
    %v544 = vpop.f32.mrb[0].mxu0
    %v545 = vadd.f32 %v101, %v544
    %v546 = vpop.f32.mrb[0].mxu0
    %v547 = vadd.f32 %v105, %v546
    %v548 = vpop.f32.mrb[0].mxu0
    %v549 = vadd.f32 %v101, %v548
    %v550 = vpop.f32.mrb[0].mxu0
    %v551 = vadd.f32 %v105, %v550
    %552 = vmatprep.mubr.bf16.mxu0 0
    %553 = vmatmul.mubr.bf16.gmra.mrb[0].mxu0 %v142
    %v554 = vpop.f32.mrb[0].mxu0
    %v555 = vadd.f32 %v101, %v554
    %v556 = vpop.f32.mrb[0].mxu0
    %v557 = vadd.f32 %v105, %v556
    %v558 = vpop.f32.mrb[0].mxu0
    %v559 = vadd.f32 %v101, %v558
    %v560 = vpop.f32.mrb[0].mxu0
    %v561 = vadd.f32 %v105, %v560
    %562 = vmatprep.mubr.bf16.mxu0 0
    %563 = vmatmul.mubr.bf16.gmra.mrb[0].mxu0 %v143
    %v564 = vpop.f32.mrb[0].mxu0
    %v565 = vadd.f32 %v101, %v564
    %v566 = vpop.f32.mrb[0].mxu0
    %v567 = vadd.f32 %v105, %v566
    %v568 = vpop.f32.mrb[0].mxu0
    %v569 = vadd.f32 %v101, %v568
    %v570 = vpop.f32.mrb[0].mxu0
    %v571 = vadd.f32 %v105, %v570
    %572 = vmatprep.mubr.bf16.mxu0 0
    %573 = vmatmul.mubr.bf16.gmra.mrb[0].mxu0 %v144
    %v574 = vpop.f32.mrb[0].mxu0
    %v575 = vadd.f32 %v101, %v574
    %v576 = vpop.f32.mrb[0].mxu0
    %v577 = vadd.f32 %v105, %v576
    %v578 = vpop.f32.mrb[0].mxu0
    %v579 = vadd.f32 %v101, %v578
    %v580 = vpop.f32.mrb[0].mxu0
    %v581 = vadd.f32 %v105, %v580
    %582 = vdwg.mxu0
    %583 = vmatprep.subr.bf16.mxu0 %v330
    %584 = vmatpush1.bf16.msra.mxu0 %v329
    %585 = vmatprep.subr.bf16.mxu0 %v337
    %586 = vmatpush1.bf16.msra.mxu0 %v336
    %587 = vmatprep.subr.bf16.mxu0 %v344
    %588 = vmatpush1.bf16.msra.mxu0 %v343
    %589 = vmatprep.subr.bf16.mxu0 %v351
    %590 = vmatpush1.bf16.msra.mxu0 %v350
    %591 = vmatprep.subr.bf16.mxu0 %v358
    %592 = vmatpush1.bf16.msra.mxu0 %v357
    %593 = vmatprep.subr.bf16.mxu0 %v365
    %594 = vmatpush1.bf16.msra.mxu0 %v364
    %595 = vmatprep.subr.bf16.mxu0 %v372
    %596 = vmatpush1.bf16.msra.mxu0 %v371
    %597 = vmatprep.subr.bf16.mxu0 %v379
    %598 = vmatpush1.bf16.msra.mxu0 %v378
    %599 = vmatprep.subr.bf16.mxu0 0
    %600 = vmatpush1.bf16.msra.mxu0 0
    %601 = vmatprep.subr.bf16.mxu0 0
    %602 = vmatpush1.bf16.msra.mxu0 0
    %603 = vmatprep.subr.bf16.mxu0 0
    %604 = vmatpush1.bf16.msra.mxu0 0
    %605 = vmatprep.subr.bf16.mxu0 0
    %606 = vmatpush1.bf16.msra.mxu0 0
    %607 = vmatprep.subr.bf16.mxu0 0
    %608 = vmatpush1.bf16.msra.mxu0 0
    %609 = vmatprep.subr.bf16.mxu0 0
    %610 = vmatpush1.bf16.msra.mxu0 0
    %611 = vmatprep.subr.bf16.mxu0 0
    %612 = vmatpush1.bf16.msra.mxu0 0
    %613 = vmatprep.subr.bf16.mxu0 0
    %614 = vmatpush1.bf16.msra.mxu0 0
    %615 = vmatprep.mubr.bf16.mxu0 0
    %616 = vmatmul.mubr.bf16.gmra.mrb[0].mxu0 %v141
    %v617 = vpop.f32.mrb[0].mxu0
    %v618 = vadd.f32 %v109, %v617
    %v619 = vpop.f32.mrb[0].mxu0
    %v620 = vadd.f32 %v113, %v619
    %v621 = vpop.f32.mrb[0].mxu0
    %v622 = vadd.f32 %v109, %v621
    %v623 = vpop.f32.mrb[0].mxu0
    %v624 = vadd.f32 %v113, %v623
    %625 = vmatprep.mubr.bf16.mxu0 0
    %626 = vmatmul.mubr.bf16.gmra.mrb[0].mxu0 %v142
    %v627 = vpop.f32.mrb[0].mxu0
    %v628 = vadd.f32 %v109, %v627
    %v629 = vpop.f32.mrb[0].mxu0
    %v630 = vadd.f32 %v113, %v629
    %v631 = vpop.f32.mrb[0].mxu0
    %v632 = vadd.f32 %v109, %v631
    %v633 = vpop.f32.mrb[0].mxu0
    %v634 = vadd.f32 %v113, %v633
    %635 = vmatprep.mubr.bf16.mxu0 0
    %636 = vmatmul.mubr.bf16.gmra.mrb[0].mxu0 %v143
    %v637 = vpop.f32.mrb[0].mxu0
    %v638 = vadd.f32 %v109, %v637
    %v639 = vpop.f32.mrb[0].mxu0
    %v640 = vadd.f32 %v113, %v639
    %v641 = vpop.f32.mrb[0].mxu0
    %v642 = vadd.f32 %v109, %v641
    %v643 = vpop.f32.mrb[0].mxu0
    %v644 = vadd.f32 %v113, %v643
    %645 = vmatprep.mubr.bf16.mxu0 0
    %646 = vmatmul.mubr.bf16.gmra.mrb[0].mxu0 %v144
    %v647 = vpop.f32.mrb[0].mxu0
    %v648 = vadd.f32 %v109, %v647
    %v649 = vpop.f32.mrb[0].mxu0
    %v650 = vadd.f32 %v113, %v649
    %v651 = vpop.f32.mrb[0].mxu0
    %v652 = vadd.f32 %v109, %v651
    %v653 = vpop.f32.mrb[0].mxu0
    %v654 = vadd.f32 %v113, %v653
    %655 = vdwg.mxu0
    %656 = vmatprep.subr.bf16.mxu0 0
    %657 = vmatpush1.bf16.msra.mxu0 %v331
    %658 = vmatprep.subr.bf16.mxu0 0
    %659 = vmatpush1.bf16.msra.mxu0 %v338
    %660 = vmatprep.subr.bf16.mxu0 0
    %661 = vmatpush1.bf16.msra.mxu0 %v345
    %662 = vmatprep.subr.bf16.mxu0 0
    %663 = vmatpush1.bf16.msra.mxu0 %v352
    %664 = vmatprep.subr.bf16.mxu0 0
    %665 = vmatpush1.bf16.msra.mxu0 %v359
    %666 = vmatprep.subr.bf16.mxu0 0
    %667 = vmatpush1.bf16.msra.mxu0 %v366
    %668 = vmatprep.subr.bf16.mxu0 0
    %669 = vmatpush1.bf16.msra.mxu0 %v373
    %670 = vmatprep.subr.bf16.mxu0 0
    %671 = vmatpush1.bf16.msra.mxu0 %v380
    %672 = vmatprep.subr.bf16.mxu0 0
    %673 = vmatpush1.bf16.msra.mxu0 0
    %674 = vmatprep.subr.bf16.mxu0 0
    %675 = vmatpush1.bf16.msra.mxu0 0
    %676 = vmatprep.subr.bf16.mxu0 0
    %677 = vmatpush1.bf16.msra.mxu0 0
    %678 = vmatprep.subr.bf16.mxu0 0
    %679 = vmatpush1.bf16.msra.mxu0 0
    %680 = vmatprep.subr.bf16.mxu0 0
    %681 = vmatpush1.bf16.msra.mxu0 0
    %682 = vmatprep.subr.bf16.mxu0 0
    %683 = vmatpush1.bf16.msra.mxu0 0
    %684 = vmatprep.subr.bf16.mxu0 0
    %685 = vmatpush1.bf16.msra.mxu0 0
    %686 = vmatprep.subr.bf16.mxu0 0
    %687 = vmatpush1.bf16.msra.mxu0 0
    %688 = vmatprep.mubr.bf16.mxu0 0
    %689 = vmatmul.mubr.bf16.gmra.mrb[0].mxu0 %v141
    %v690 = vpop.f32.mrb[0].mxu0
    %v691 = vadd.f32 %v117, %v690
    %v692 = vpop.f32.mrb[0].mxu0
    %v693 = vpop.f32.mrb[0].mxu0
    %v694 = vadd.f32 %v117, %v693
    %v695 = vpop.f32.mrb[0].mxu0
    %696 = vmatprep.mubr.bf16.mxu0 0
    %697 = vmatmul.mubr.bf16.gmra.mrb[0].mxu0 %v142
    %v698 = vpop.f32.mrb[0].mxu0
    %v699 = vadd.f32 %v117, %v698
    %v700 = vpop.f32.mrb[0].mxu0
    %v701 = vpop.f32.mrb[0].mxu0
    %v702 = vadd.f32 %v117, %v701
    %v703 = vpop.f32.mrb[0].mxu0
    %704 = vmatprep.mubr.bf16.mxu0 0
    %705 = vmatmul.mubr.bf16.gmra.mrb[0].mxu0 %v143
    %v706 = vpop.f32.mrb[0].mxu0
    %v707 = vadd.f32 %v117, %v706
    %v708 = vpop.f32.mrb[0].mxu0
    %v709 = vpop.f32.mrb[0].mxu0
    %v710 = vadd.f32 %v117, %v709
    %v711 = vpop.f32.mrb[0].mxu0
    %712 = vmatprep.mubr.bf16.mxu0 0
    %713 = vmatmul.mubr.bf16.gmra.mrb[0].mxu0 %v144
    %v714 = vpop.f32.mrb[0].mxu0
    %v715 = vadd.f32 %v117, %v714
    %v716 = vpop.f32.mrb[0].mxu0
    %v717 = vpop.f32.mrb[0].mxu0
    %v718 = vadd.f32 %v117, %v717
    %v719 = vpop.f32.mrb[0].mxu0
    %720 = vdwg.mxu0
    %v721 = vtanh.pop %v472
    %v722 = vtanh.pop %v474
    %v723 = vtanh.pop %v545
    %v724 = vtanh.pop %v547
    %v725 = vtanh.pop %v618
    %v726 = vtanh.pop %v620
    %v727 = vtanh.pop %v691
    %v728 = vtanh.pop %v476
    %v729 = vtanh.pop %v478
    %v730 = vtanh.pop %v549
    %v731 = vtanh.pop %v551
    %v732 = vtanh.pop %v622
    %v733 = vtanh.pop %v624
    %v734 = vtanh.pop %v694
    %v735 = vtanh.pop %v482
    %v736 = vtanh.pop %v484
    %v737 = vtanh.pop %v555
    %v738 = vtanh.pop %v557
    %v739 = vtanh.pop %v628
    %v740 = vtanh.pop %v630
    %v741 = vtanh.pop %v699
    %v742 = vtanh.pop %v486
    %v743 = vtanh.pop %v488
    %v744 = vtanh.pop %v559
    %v745 = vtanh.pop %v561
    %v746 = vtanh.pop %v632
    %v747 = vtanh.pop %v634
    %v748 = vtanh.pop %v702
    %v749 = vtanh.pop %v492
    %v750 = vtanh.pop %v494
    %v751 = vtanh.pop %v565
    %v752 = vtanh.pop %v567
    %v753 = vtanh.pop %v638
    %v754 = vtanh.pop %v640
    %v755 = vtanh.pop %v707
    %v756 = vtanh.pop %v496
    %v757 = vtanh.pop %v498
    %v758 = vtanh.pop %v569
    %v759 = vtanh.pop %v571
    %v760 = vtanh.pop %v642
    %v761 = vtanh.pop %v644
    %v762 = vtanh.pop %v710
    %v763 = vtanh.pop %v502
    %v764 = vtanh.pop %v504
    %v765 = vtanh.pop %v575
    %v766 = vtanh.pop %v577
    %v767 = vtanh.pop %v648
    %v768 = vtanh.pop %v650
    %v769 = vtanh.pop %v715
    %v770 = vtanh.pop %v506
    %v771 = vtanh.pop %v508
    %v772 = vtanh.pop %v579
    %v773 = vtanh.pop %v581
    %v774 = vtanh.pop %v652
    %v775 = vtanh.pop %v654
    %v776 = vtanh.pop %v718
    %777 = vst [vmem:[#allocation2] sm:$0xff] %v721
    %778 = vst [vmem:[#allocation2 + $0x8] sm:$0xff] %v722
    %779 = vst [vmem:[#allocation2 + $0x10] sm:$0xff] %v723
    %780 = vst [vmem:[#allocation2 + $0x18] sm:$0xff] %v724
    %781 = vst [vmem:[#allocation2 + $0x20] sm:$0xff] %v725
    %782 = vst [vmem:[#allocation2 + $0x28] sm:$0xff] %v726
    %vm783 = vcmask 130048
    %784 = vst.msk [vmem:[#allocation2 + $0x30] sm:$0xff] %vm783, %v727
    %785 = vst [vmem:[#allocation2 + $0x38] sm:$0xff] %v728
    %786 = vst [vmem:[#allocation2 + $0x40] sm:$0xff] %v729
    %787 = vst [vmem:[#allocation2 + $0x48] sm:$0xff] %v730
    %788 = vst [vmem:[#allocation2 + $0x50] sm:$0xff] %v731
    %789 = vst [vmem:[#allocation2 + $0x58] sm:$0xff] %v732
    %790 = vst [vmem:[#allocation2 + $0x60] sm:$0xff] %v733
    %791 = vst.msk [vmem:[#allocation2 + $0x68] sm:$0xff] %vm783, %v734
    %792 = vst [vmem:[#allocation2 + $0x70] sm:$0xff] %v735
    %793 = vst [vmem:[#allocation2 + $0x78] sm:$0xff] %v736
    %794 = vst [vmem:[#allocation2 + $0x80] sm:$0xff] %v737
    %795 = vst [vmem:[#allocation2 + $0x88] sm:$0xff] %v738
    %796 = vst [vmem:[#allocation2 + $0x90] sm:$0xff] %v739
    %797 = vst [vmem:[#allocation2 + $0x98] sm:$0xff] %v740
    %798 = vst.msk [vmem:[#allocation2 + $0xa0] sm:$0xff] %vm783, %v741
    %799 = vst [vmem:[#allocation2 + $0xa8] sm:$0xff] %v742
    %800 = vst [vmem:[#allocation2 + $0xb0] sm:$0xff] %v743
    %801 = vst [vmem:[#allocation2 + $0xb8] sm:$0xff] %v744
    %802 = vst [vmem:[#allocation2 + $0xc0] sm:$0xff] %v745
    %803 = vst [vmem:[#allocation2 + $0xc8] sm:$0xff] %v746
    %804 = vst [vmem:[#allocation2 + $0xd0] sm:$0xff] %v747
    %805 = vst.msk [vmem:[#allocation2 + $0xd8] sm:$0xff] %vm783, %v748
    %806 = vst [vmem:[#allocation2 + $0xe0] sm:$0xff] %v749
    %807 = vst [vmem:[#allocation2 + $0xe8] sm:$0xff] %v750
    %808 = vst [vmem:[#allocation2 + $0xf0] sm:$0xff] %v751
    %809 = vst [vmem:[#allocation2 + $0xf8] sm:$0xff] %v752
    %810 = vst [vmem:[#allocation2 + $0x100] sm:$0xff] %v753
    %811 = vst [vmem:[#allocation2 + $0x108] sm:$0xff] %v754
    %812 = vst.msk [vmem:[#allocation2 + $0x110] sm:$0xff] %vm783, %v755
    %813 = vst [vmem:[#allocation2 + $0x118] sm:$0xff] %v756
    %814 = vst [vmem:[#allocation2 + $0x120] sm:$0xff] %v757
    %815 = vst [vmem:[#allocation2 + $0x128] sm:$0xff] %v758
    %816 = vst [vmem:[#allocation2 + $0x130] sm:$0xff] %v759
    %817 = vst [vmem:[#allocation2 + $0x138] sm:$0xff] %v760
    %818 = vst [vmem:[#allocation2 + $0x140] sm:$0xff] %v761
    %819 = vst.msk [vmem:[#allocation2 + $0x148] sm:$0xff] %vm783, %v762
    %820 = vst [vmem:[#allocation2 + $0x150] sm:$0xff] %v763
    %821 = vst [vmem:[#allocation2 + $0x158] sm:$0xff] %v764
    %822 = vst [vmem:[#allocation2 + $0x160] sm:$0xff] %v765
    %823 = vst [vmem:[#allocation2 + $0x168] sm:$0xff] %v766
    %824 = vst [vmem:[#allocation2 + $0x170] sm:$0xff] %v767
    %825 = vst [vmem:[#allocation2 + $0x178] sm:$0xff] %v768
    %826 = vst.msk [vmem:[#allocation2 + $0x180] sm:$0xff] %vm783, %v769
    %827 = vst [vmem:[#allocation2 + $0x188] sm:$0xff] %v770
    %828 = vst [vmem:[#allocation2 + $0x190] sm:$0xff] %v771
    %829 = vst [vmem:[#allocation2 + $0x198] sm:$0xff] %v772
    %830 = vst [vmem:[#allocation2 + $0x1a0] sm:$0xff] %v773
    %831 = vst [vmem:[#allocation2 + $0x1a8] sm:$0xff] %v774
    %832 = vst [vmem:[#allocation2 + $0x1b0] sm:$0xff] %v775
    %833 = vst.msk [vmem:[#allocation2 + $0x1b8] sm:$0xff] %vm783, %v776
    // Predicated region
    $region14: #{forward.3} parent=1 // pred_check
      _
    $region15: #{forward.3} parent=1 // pred_check_branch
      %835 = sbr.rel (0) target = $region17
    $region16: #{forward.3} parent=1 // pred_region
      %s837 = ssub.s32 7168, 7168
      %838 = vsyncadd [#allocation3], %s837
      %s839 = sshll.u32 [#allocation2], 4
      %s840 = int_to_ptr.vmem [resolvable:$true] %s839
      %845 = dma.vmem_to_hbm [thread:$0]  %s840, 7168, %s3, [#allocation3], 896, 896, 56
    $region17: #{forward.3} parent=1 // pred_fallthru
      _
    // Predicated region
    $region18: #{forward.3} parent=1 // pred_check
      _
    $region19: #{forward.3} parent=1 // pred_check_branch
      %847 = sbr.rel (0) target = $region21
    $region20: #{forward.3} parent=1 // pred_region
      %848 = dma.done [#allocation3], 7168
    $region21: #{forward.3} parent=1 // pred_fallthru
      _
    %849 = vsyncpa [#allocation3], 1

</llo_original>
